<compile_context>
chip_gen: v6e
topology: v6e:2x2x1
jax: 0.10.0
libtpu: 0.0.40
codegen_flags: <defaults>
</compile_context>

<pallas_src>
import jax
import jax.numpy as jnp
from jax.experimental import pallas as pl
from jax.experimental.pallas import tpu as pltpu


def _round_up(x, m):
    return (x + m - 1) // m * m


# --------------------------------------------------------------------------- #
# Kernel body
# --------------------------------------------------------------------------- #
def _fused_kernel(x_ref, w_ref, b_ref, p_ref, o_ref):
    # x_ref: (TM, W)      batch-row tile (rows = flattened B*H)
    # w_ref: (W, Ctot)    block-diagonal conv weights of all scales  (VMEM resident)
    # b_ref: (1, Ctot)    matching bias row                          (VMEM resident)
    # p_ref: (Ctot, F*S)  per-window mean + channel concat matrix    (VMEM resident)
    # o_ref: (TM, F*S)    written once per tile (no accumulator revisit)
    h = jnp.dot(x_ref[...], w_ref[...], preferred_element_type=jnp.float32)
    h = jnp.maximum(h + b_ref[...], 0.0)          # conv + bias + ReLU for every scale/window
    o_ref[...] = jnp.dot(h, p_ref[...], preferred_element_type=jnp.float32)


# --------------------------------------------------------------------------- #
# Fused weight construction (trace-time, tiny)
# --------------------------------------------------------------------------- #
def _build_fused_weights(params, W):
    """params: list of (weight (F,1,1,K), bias (F,)).  Returns
    Wbig (W, Ctot), bias (1, Ctot), pool (Ctot, F*S)."""
    F_ = params[0][0].shape[0]
    wcols, bcols, pblocks = [], [], []
    for w, b in params:
        K = w.shape[-1]
        Wo = W // K
        assert Wo >= 1, "input width smaller than conv kernel"
        w2 = w.reshape(F_, K).T.astype(jnp.float32)                  # (K, F)
        blk = jax.scipy.linalg.block_diag(*([w2] * Wo))              # (Wo*K, Wo*F)
        if Wo * K < W:                                               # truncated tail cols
            blk = jnp.pad(blk, ((0, W - Wo * K), (0, 0)))
        wcols.append(blk)                                            # (W, Wo*F)
        bcols.append(jnp.tile(b.astype(jnp.float32), Wo))            # (Wo*F,)
        pblocks.append(jnp.tile(jnp.eye(F_, dtype=jnp.float32), (Wo, 1)) / Wo)  # (Wo*F, F)
    wbig = jnp.concatenate(wcols, axis=1)                            # (W, Ctot)
    bias = jnp.concatenate(bcols)[None, :]                           # (1, Ctot)
    pool = jax.scipy.linalg.block_diag(*pblocks)                     # (Ctot, F*S)
    return wbig, bias, pool


# --------------------------------------------------------------------------- #
# Tiling / pallas_call wrapper
# --------------------------------------------------------------------------- #
def _pick_tile(M, tm_cap):
    n_tiles = pl.cdiv(M, tm_cap)
    if M >= 512 and n_tiles < 2:
        n_tiles = 2        # give the v7x megacore >= 2 batch tiles to shard
    return max(8, _round_up(pl.cdiv(M, n_tiles), 8))


def _fused_forward_rows(x2, wbig, bias, pool, *, tm_cap=2048):
    """x2: (M, W) float32 rows = flattened (batch, height). Returns (M, F*S) f32."""
    M, W = x2.shape
    Ctot = wbig.shape[1]
    Cout = pool.shape[1]

    TM = _pick_tile(M, tm_cap)
    M_pad = _round_up(M, TM)
    if M_pad != M:
        # padded rows only produce relu(bias); they are sliced off below.
        x2 = jnp.pad(x2, ((0, M_pad - M), (0, 0)))

    grid = (M_pad // TM,)

    out = pl.pallas_call(
        _fused_kernel,
        out_shape=jax.ShapeDtypeStruct((M_pad, Cout), jnp.float32),
        grid_spec=pltpu.PrefetchScalarGridSpec(
            num_scalar_prefetch=0,
            grid=grid,
            in_specs=[
                pl.BlockSpec((TM, W), lambda i: (i, 0)),        # raw x rows, read once
                pl.BlockSpec((W, Ctot), lambda i: (0, 0)),      # resident fused weight
                pl.BlockSpec((1, Ctot), lambda i: (0, 0)),      # resident bias
                pl.BlockSpec((Ctot, Cout), lambda i: (0, 0)),   # resident pool matrix
            ],
            out_specs=pl.BlockSpec((TM, Cout), lambda i: (i, 0)),
        ),
        compiler_params=pltpu.CompilerParams(
            dimension_semantics=("parallel",)),
    )(x2, wbig, bias, pool)

    return out[:M]


def multi_scale_txt_forward(x, params, *, tm_cap=2048, min_rows_for_pallas=64):
    """x: (B, 1, H, W) float32; params: list of (weight (F,1,1,5*scale), bias (F,)).
    Returns (B, F*num_scales, H, 1), matching torch.cat(dim=1)."""
    B, C, H, W = x.shape
    assert C == 1
    M = B * H
    F_ = params[0][0].shape[0]
    S = len(params)

    if M < min_rows_for_pallas:
        # Tiny input: pallas_call fixed cost dominates -> plain einsum fallback.
        return _reference_forward(x, params)

    x2 = x.reshape(M, W)                                   # contiguous, copy-free
    wbig, bias, pool = _build_fused_weights(params, W)
    y2 = _fused_forward_rows(x2, wbig, bias, pool, tm_cap=tm_cap)   # (M, F*S)

    # small output-only relayout to torch's channel-major (B, F*S, H, 1)
    y = y2.reshape(B, H, F_ * S).transpose(0, 2, 1)[..., None]
    return y


# --------------------------------------------------------------------------- #
# Init + pure-JAX reference (mirrors the PyTorch module)
# --------------------------------------------------------------------------- #
def init_multi_scale_txt_params(key, n_filters, scales):
    """Matches nn.init.normal_(std=0.01) on Conv2d weights and biases."""
    params = []
    for s in scales:
        key, kw, kb = jax.random.split(key, 3)
        K = 5 * s
        w = 0.01 * jax.random.normal(kw, (n_filters, 1, 1, K), jnp.float32)
        b = 0.01 * jax.random.normal(kb, (n_filters,), jnp.float32)
        params.append((w, b))
    return params


def _reference_forward(x, params):
    """Pure-JAX reference mirroring the PyTorch semantics."""
    B, _, H, W = x.shape
    outs = []
    for w, b in params:
        F_ = w.shape[0]
        K = w.shape[-1]
        Wo = W // K
        xw = x[:, 0, :, : Wo * K].reshape(B, H, Wo, K)
        s = jnp.einsum('bhwk,fk->bfhw', xw, w.reshape(F_, K))
        s = jnp.maximum(s + b[None, :, None, None], 0.0)
        outs.append(jnp.mean(s, axis=3, keepdims=True))      # (B, F, H, 1)
    return jnp.concatenate(outs, axis=1)


# --------------------------------------------------------------------------- #
if __name__ == "__main__":
    key = jax.random.PRNGKey(0)
    n_filters = 16
    scales = (1, 2, 4)            # conv kernel widths 5, 10, 20
    B, H, W = 256, 2, 80          # text input (B, 1, H, W); M = B*H = 512 rows

    kx, kp = jax.random.split(key)
    x = jax.random.normal(kx, (B, 1, H, W), jnp.float32)
    params = init_multi_scale_txt_params(kp, n_filters, scales)

    fwd = jax.jit(lambda xx: multi_scale_txt_forward(xx, params))
    y = jax.block_until_ready(fwd(x))

    y_ref = _reference_forward(x, params)
    assert y.shape == (B, n_filters * len(scales), H, 1), y.shape
    assert jnp.allclose(y, y_ref, atol=1e-5, rtol=1e-5)

    print("KERNEL_OK")
</pallas_src>

<mosaic_0001>
module attributes {stable_mosaic.version = 11 : i64} {
  func.func @_fused_kernel(%arg0: i32, %arg1: memref<256x80xf32, #tpu.memory_space<vmem>>, %arg2: memref<80x448xf32, #tpu.memory_space<vmem>>, %arg3: memref<1x448xf32, #tpu.memory_space<vmem>>, %arg4: memref<448x48xf32, #tpu.memory_space<vmem>>, %arg5: memref<256x48xf32, #tpu.memory_space<vmem>>) attributes {dimension_semantics = [#tpu.dimension_semantics<parallel>], iteration_bounds = array<i64: 2>, scalar_prefetch = 0 : i64, scratch_operands = 0 : i64, tpu.core_type = #tpu.core_type<tc>, window_params = [{transform_indices = @transform_0, window_bounds = array<i64: 256, 80>}, {pipeline_mode = #tpu.pipeline_mode<synchronous>, transform_indices = @transform_1, window_bounds = array<i64: 80, 448>}, {pipeline_mode = #tpu.pipeline_mode<synchronous>, transform_indices = @transform_2, window_bounds = array<i64: 1, 448>}, {pipeline_mode = #tpu.pipeline_mode<synchronous>, transform_indices = @transform_3, window_bounds = array<i64: 448, 48>}, {transform_indices = @transform_4, window_bounds = array<i64: 256, 48>}]} {
    %c0 = arith.constant 0 : index
    %c0_0 = arith.constant 0 : index
    %0 = vector.load %arg1[%c0, %c0_0] : memref<256x80xf32, #tpu.memory_space<vmem>>, vector<256x80xf32>
    %c0_1 = arith.constant 0 : index
    %c0_2 = arith.constant 0 : index
    %1 = vector.load %arg2[%c0_1, %c0_2] : memref<80x448xf32, #tpu.memory_space<vmem>>, vector<80x448xf32>
    %cst = arith.constant dense<0.000000e+00> : vector<256x448xf32>
    %2 = tpu.matmul %0, %1, %cst {dimension_numbers = #tpu.dot_dimension_numbers<[1], [0], [0], [1], [0, 0, 1, 1], [], []>} : vector<256x80xf32>, vector<80x448xf32>, vector<256x448xf32> -> vector<256x448xf32>
    %c0_3 = arith.constant 0 : index
    %c0_4 = arith.constant 0 : index
    %3 = vector.load %arg3[%c0_3, %c0_4] : memref<1x448xf32, #tpu.memory_space<vmem>>, vector<1x448xf32>
    %4 = vector.broadcast %3 : vector<1x448xf32> to vector<256x448xf32>
    %5 = arith.addf %2, %4 : vector<256x448xf32>
    %cst_5 = arith.constant 0.000000e+00 : f32
    %6 = vector.broadcast %cst_5 : f32 to vector<256x448xf32>
    %7 = arith.maximumf %5, %6 : vector<256x448xf32>
    %c0_6 = arith.constant 0 : index
    %c0_7 = arith.constant 0 : index
    %8 = vector.load %arg4[%c0_6, %c0_7] : memref<448x48xf32, #tpu.memory_space<vmem>>, vector<448x48xf32>
    %cst_8 = arith.constant dense<0.000000e+00> : vector<256x48xf32>
    %9 = tpu.matmul %7, %8, %cst_8 {dimension_numbers = #tpu.dot_dimension_numbers<[1], [0], [0], [1], [0, 0, 1, 1], [], []>} : vector<256x448xf32>, vector<448x48xf32>, vector<256x48xf32> -> vector<256x48xf32>
    %c0_9 = arith.constant 0 : index
    %c0_10 = arith.constant 0 : index
    %10 = vector.load %arg5[%c0_9, %c0_10] : memref<256x48xf32, #tpu.memory_space<vmem>>, vector<256x48xf32>
    tpu.vector_store %arg5[%c0_9, %c0_10], %9 {strides = array<i32>} : memref<256x48xf32, #tpu.memory_space<vmem>>, vector<256x48xf32>,
    return
  }
  func.func @transform_0(%arg0: i32) -> (i32, i32) {
    %c0_i32 = arith.constant 0 : i32
    %c0_i32_0 = arith.constant 0 : i32
    return %arg0, %c0_i32 : i32, i32
  }
  func.func @transform_1(%arg0: i32) -> (i32, i32) {
    %c0_i32 = arith.constant 0 : i32
    %c0_i32_0 = arith.constant 0 : i32
    %c0_i32_1 = arith.constant 0 : i32
    return %c0_i32, %c0_i32_0 : i32, i32
  }
  func.func @transform_2(%arg0: i32) -> (i32, i32) {
    %c0_i32 = arith.constant 0 : i32
    %c0_i32_0 = arith.constant 0 : i32
    %c0_i32_1 = arith.constant 0 : i32
    return %c0_i32, %c0_i32_0 : i32, i32
  }
  func.func @transform_3(%arg0: i32) -> (i32, i32) {
    %c0_i32 = arith.constant 0 : i32
    %c0_i32_0 = arith.constant 0 : i32
    %c0_i32_1 = arith.constant 0 : i32
    return %c0_i32, %c0_i32_0 : i32, i32
  }
  func.func @transform_4(%arg0: i32) -> (i32, i32) {
    %c0_i32 = arith.constant 0 : i32
    %c0_i32_0 = arith.constant 0 : i32
    return %arg0, %c0_i32 : i32, i32
  }
}

</mosaic_0001>

<llo_original>
// kernel: tile.48
$region0: #{tile.48}
  %s0 = inlined_call_operand.vmem [shape: f32[4,16], index: 0, kind: input, shape index: {}]
  %s1 = inlined_call_operand.vmem [shape: f32[64], index: 1, kind: output, shape index: {}]
  $region1: #{tile.48} parent=0
    #allocation0 [shape = 'u8[4096]{0}', space=vmem, size = 0x1000, scoped, tag = 'scoped mem for output reshape']
    #allocation1 [shape = 'u8[4096]{0}', space=vmem, size = 0x1000, scoped, tag = 'scoped mem for input reshape']
    %s3 = sshll.u32 1, 4
    %s4 = ssub.s32 %s3, 1
    %v5 = vld [vmem:[%s0] sm:%s4]
    %6 = vst [vmem:[#allocation1] sm:%s4] %v5
    %v7 = vld [vmem:[#allocation1] sm:$0x1]
    %vm8 = vcmask 130048
    %9 = vst.msk [vmem:[#allocation0] sm:$0x1] %vm8, %v7
    %s10 = scalar_lea.vmem [#allocation1], 3
    %v11 = vld [vmem:[%s10] sm:$0x1]
    %12 = vrot.lane.b32.xlu0 %v11, 48
    %v13 = vpop.permute.xlu0 %12
    %vm14 = vcmask 523648
    %15 = vst.msk [vmem:[#allocation0] sm:$0x1] %vm14, %v13
    %s16 = scalar_lea.vmem [#allocation1], 2
    %v17 = vld [vmem:[%s16] sm:$0x1]
    %18 = vrot.lane.b32.xlu0 %v17, 32
    %v19 = vpop.permute.xlu0 %18
    %vm20 = vcmask 392448
    %21 = vst.msk [vmem:[#allocation0] sm:$0x1] %vm20, %v19
    %s22 = scalar_lea.vmem [#allocation1], 1
    %v23 = vld [vmem:[%s22] sm:$0x1]
    %24 = vrot.lane.b32.xlu0 %v23, 16
    %v25 = vpop.permute.xlu0 %24
    %vm26 = vcmask 261248
    %27 = vst.msk [vmem:[#allocation0] sm:$0x1] %vm26, %v25
    %s29 = sshll.u32 1, 1
    %s30 = ssub.s32 %s29, 1
    %v32 = vld [vmem:[#allocation0] sm:%s30]
    %s33 = sshll.u32 1, 1
    %s34 = ssub.s32 %s33, 1
    %35 = vst [vmem:[%s1] sm:%s34] %v32

// kernel: tile.39
$region0: #{tile.39}
  %s0 = inlined_call_operand.vmem [shape: f32[8,16], index: 0, kind: input, shape index: {}]
  %s1 = inlined_call_operand.vmem [shape: f32[128], index: 1, kind: output, shape index: {}]
  $region1: #{tile.39} parent=0
    #allocation0 [shape = 'u8[4096]{0}', space=vmem, size = 0x1000, scoped, tag = 'scoped mem for output reshape']
    %v2 = vld [vmem:[%s0] sm:$0x1]
    %vm3 = vcmask 130048
    %4 = vst.msk [vmem:[#allocation0] sm:$0x1] %vm3, %v2
    %s5 = scalar_lea.vmem %s0, 7
    %v6 = vld [vmem:[%s5] sm:$0x1]
    %7 = vrot.lane.b32.xlu0 %v6, 112
    %v8 = vpop.permute.xlu0 %7
    %vm9 = vcmask 1048448
    %10 = vst.msk [vmem:[#allocation0] sm:$0x1] %vm9, %v8
    %s11 = scalar_lea.vmem %s0, 6
    %v12 = vld [vmem:[%s11] sm:$0x1]
    %13 = vrot.lane.b32.xlu0 %v12, 96
    %v14 = vpop.permute.xlu0 %13
    %vm15 = vcmask 917248
    %16 = vst.msk [vmem:[#allocation0] sm:$0x1] %vm15, %v14
    %s17 = scalar_lea.vmem %s0, 5
    %v18 = vld [vmem:[%s17] sm:$0x1]
    %19 = vrot.lane.b32.xlu0 %v18, 80
    %v20 = vpop.permute.xlu0 %19
    %vm21 = vcmask 786048
    %22 = vst.msk [vmem:[#allocation0] sm:$0x1] %vm21, %v20
    %s23 = scalar_lea.vmem %s0, 4
    %v24 = vld [vmem:[%s23] sm:$0x1]
    %25 = vrot.lane.b32.xlu0 %v24, 64
    %v26 = vpop.permute.xlu0 %25
    %vm27 = vcmask 654848
    %28 = vst.msk [vmem:[#allocation0] sm:$0x1] %vm27, %v26
    %s29 = scalar_lea.vmem %s0, 3
    %v30 = vld [vmem:[%s29] sm:$0x1]
    %31 = vrot.lane.b32.xlu0 %v30, 48
    %v32 = vpop.permute.xlu0 %31
    %vm33 = vcmask 523648
    %34 = vst.msk [vmem:[#allocation0] sm:$0x1] %vm33, %v32
    %s35 = scalar_lea.vmem %s0, 2
    %v36 = vld [vmem:[%s35] sm:$0x1]
    %37 = vrot.lane.b32.xlu0 %v36, 32
    %v38 = vpop.permute.xlu0 %37
    %vm39 = vcmask 392448
    %40 = vst.msk [vmem:[#allocation0] sm:$0x1] %vm39, %v38
    %s41 = scalar_lea.vmem %s0, 1
    %v42 = vld [vmem:[%s41] sm:$0x1]
    %43 = vrot.lane.b32.xlu0 %v42, 16
    %v44 = vpop.permute.xlu0 %43
    %vm45 = vcmask 261248
    %46 = vst.msk [vmem:[#allocation0] sm:$0x1] %vm45, %v44
    %s48 = sshll.u32 1, 1
    %s49 = ssub.s32 %s48, 1
    %v51 = vld [vmem:[#allocation0] sm:%s49]
    %s52 = sshll.u32 1, 1
    %s53 = ssub.s32 %s52, 1
    %54 = vst [vmem:[%s1] sm:%s53] %v51

// kernel: tile.47
$region0: #{tile.47}
  #allocation0 [shape = 's32[1]{0}', space=sflag, size = 0x4, scoped, tag = 'scoped memory for tile.47']
  %s0 = inlined_call_operand.vmem [shape: f32[16], index: 0, kind: input, shape index: {}]
  %s1 = inlined_call_operand.vmem [shape: f32[4,16], index: 1, kind: output, shape index: {}]
  // Predicated region
  $region2: #{tile.47} parent=0 // pred_check
    _
  $region3: #{tile.47} parent=0 // pred_check_branch
    %3 = sbr.rel (0) target = $region5
  $region4: #{tile.47} parent=0 // pred_region
    _
  $region5: #{tile.47} parent=0 // pred_fallthru
    _
  %v4 = vld [vmem:[%s0] ss:$0 sm:$0xff]
  %5 = vst [vmem:[%s1] sm:$0xf] %v4

// kernel: tile.38
$region0: #{tile.38}
  #allocation0 [shape = 's32[1]{0}', space=sflag, size = 0x4, scoped, tag = 'scoped memory for tile.38']
  %s0 = inlined_call_operand.vmem [shape: f32[16], index: 0, kind: input, shape index: {}]
  %s1 = inlined_call_operand.vmem [shape: f32[8,16], index: 1, kind: output, shape index: {}]
  // Predicated region
  $region2: #{tile.38} parent=0 // pred_check
    _
  $region3: #{tile.38} parent=0 // pred_check_branch
    %3 = sbr.rel (0) target = $region5
  $region4: #{tile.38} parent=0 // pred_region
    _
  $region5: #{tile.38} parent=0 // pred_fallthru
    _
  %v4 = vld [vmem:[%s0] ss:$0 sm:$0xff]
  %5 = vst [vmem:[%s1] sm:$0xff] %v4

// kernel: tile.29
$region0: #{tile.29}
  #allocation0 [shape = 's32[1]{0}', space=sflag, size = 0x4, scoped, tag = 'scoped memory for tile.29']
  %s0 = inlined_call_operand.vmem [shape: f32[16], index: 0, kind: input, shape index: {}]
  %s1 = inlined_call_operand.vmem [shape: f32[16,16], index: 1, kind: output, shape index: {}]
  // Predicated region
  $region2: #{tile.29} parent=0 // pred_check
    _
  $region3: #{tile.29} parent=0 // pred_check_branch
    %3 = sbr.rel (0) target = $region5
  $region4: #{tile.29} parent=0 // pred_region
    _
  $region5: #{tile.29} parent=0 // pred_fallthru
    _
  %v4 = vld [vmem:[%s0] ss:$0 sm:$0xff]
  %5 = vst [vmem:[%s1] sm:$0xff] %v4
  %s6 = scalar_lea.vmem %s1, 8
  %7 = vst [vmem:[%s6] sm:$0xff] %v4

// kernel: tile.30
$region0: #{tile.30}
  %s0 = inlined_call_operand.vmem [shape: f32[16,16], index: 0, kind: input, shape index: {}]
  %s1 = inlined_call_operand.vmem [shape: f32[256], index: 1, kind: output, shape index: {}]
  $region1: #{tile.30} parent=0
    #allocation0 [shape = 'u8[4096]{0}', space=vmem, size = 0x1000, scoped, tag = 'scoped mem for output reshape']
    %s2 = smov 3
    %v3 = vld [vmem:[%s0] ss:$8 sm:%s2]
    %vm4 = vcmask 130048
    %5 = vst.msk [vmem:[#allocation0] sm:$0x3] %vm4, %v3
    %s6 = scalar_lea.vmem %s0, 7
    %s7 = smov 3
    %v8 = vld [vmem:[%s6] ss:$8 sm:%s7]
    %9 = vrot.lane.b32.xlu0 %v8, 112
    %v10 = vpop.permute.xlu0 %9
    %vm11 = vcmask 1048448
    %12 = vst.msk [vmem:[#allocation0] sm:$0x3] %vm11, %v10
    %s13 = scalar_lea.vmem %s0, 6
    %s14 = smov 3
    %v15 = vld [vmem:[%s13] ss:$8 sm:%s14]
    %16 = vrot.lane.b32.xlu0 %v15, 96
    %v17 = vpop.permute.xlu0 %16
    %vm18 = vcmask 917248
    %19 = vst.msk [vmem:[#allocation0] sm:$0x3] %vm18, %v17
    %s20 = scalar_lea.vmem %s0, 5
    %s21 = smov 3
    %v22 = vld [vmem:[%s20] ss:$8 sm:%s21]
    %23 = vrot.lane.b32.xlu0 %v22, 80
    %v24 = vpop.permute.xlu0 %23
    %vm25 = vcmask 786048
    %26 = vst.msk [vmem:[#allocation0] sm:$0x3] %vm25, %v24
    %s27 = scalar_lea.vmem %s0, 4
    %s28 = smov 3
    %v29 = vld [vmem:[%s27] ss:$8 sm:%s28]
    %30 = vrot.lane.b32.xlu0 %v29, 64
    %v31 = vpop.permute.xlu0 %30
    %vm32 = vcmask 654848
    %33 = vst.msk [vmem:[#allocation0] sm:$0x3] %vm32, %v31
    %s34 = scalar_lea.vmem %s0, 3
    %s35 = smov 3
    %v36 = vld [vmem:[%s34] ss:$8 sm:%s35]
    %37 = vrot.lane.b32.xlu0 %v36, 48
    %v38 = vpop.permute.xlu0 %37
    %vm39 = vcmask 523648
    %40 = vst.msk [vmem:[#allocation0] sm:$0x3] %vm39, %v38
    %s41 = scalar_lea.vmem %s0, 2
    %s42 = smov 3
    %v43 = vld [vmem:[%s41] ss:$8 sm:%s42]
    %44 = vrot.lane.b32.xlu0 %v43, 32
    %v45 = vpop.permute.xlu0 %44
    %vm46 = vcmask 392448
    %47 = vst.msk [vmem:[#allocation0] sm:$0x3] %vm46, %v45
    %s48 = scalar_lea.vmem %s0, 1
    %s49 = smov 3
    %v50 = vld [vmem:[%s48] ss:$8 sm:%s49]
    %51 = vrot.lane.b32.xlu0 %v50, 16
    %v52 = vpop.permute.xlu0 %51
    %vm53 = vcmask 261248
    %54 = vst.msk [vmem:[#allocation0] sm:$0x3] %vm53, %v52
    %s56 = sshll.u32 1, 2
    %s57 = ssub.s32 %s56, 1
    %v59 = vld [vmem:[#allocation0] sm:%s57]
    %s60 = sshll.u32 1, 2
    %s61 = ssub.s32 %s60, 1
    %62 = vst [vmem:[%s1] sm:%s61] %v59

// kernel: _lambda_.1
$region0: #{_lambda_.1}
  #allocation0 [shape = 'u32[]', space=smem, size = 0x4, offset = 0x4, fixed_abs, tag = 'smem constant byte address 0x4 - core index']
  #allocation1 [shape = 'u32[144,128]{1,0:T(1,128)}', space=vmem, size = 0x12000, scoped, tag = 'internal scratch']
  %s0 = inlined_call_operand.vmem [shape: f32[512,80], index: 0, kind: input, shape index: {}]
  %s1 = inlined_call_operand.vmem [shape: f32[80,448], index: 1, kind: input, shape index: {}]
  %s2 = inlined_call_operand.vmem [shape: f32[1,448], index: 2, kind: input, shape index: {}]
  %s3 = inlined_call_operand.vmem [shape: f32[448,48], index: 3, kind: input, shape index: {}]
  %s4 = inlined_call_operand.vmem [shape: f32[512,48], index: 4, kind: output, shape index: {}]
  %s5 = sld [smem:[#allocation0]]
  $region49: #{_lambda_.1} parent=0
    _
  %s7 = ssub.s32 1, %s5
  %s8 = scalar_select 0, %s7, %s5
  loop: start=0, step=1, limit=4
  $region2: #{_lambda_.1} parent=0 // loop_pre_header
    _
  $region3: #{_lambda_.1} parent=0 // loop_header
    %s10 = sphi 0, %s14
    %p11 = scmp.ge.s32.totalorder %s10, 4
    %s20 = sphi 0, %s22
    %s23 = sphi 0, %s20
    %s24 = sphi 0, %s23
    %s40 = sphi 0, %s24
    %s44 = sphi 0, %s44
    %s46 = sphi 0, %s44
    %s47 = sphi 0, %s46
    %s61 = sphi 0, %s47
    %s65 = sphi 0, %s65
    %s67 = sphi 0, %s65
    %s68 = sphi 0, %s67
    %s82 = sphi 0, %s68
    %s86 = sphi 0, %s86
    %s88 = sphi 0, %s86
    %s89 = sphi 0, %s88
    %s103 = sphi 0, %s89
    %s109 = sphi 0, %s111
    %s112 = sphi 0, %s109
    %s113 = sphi 0, %s112
    %s129 = sphi 0, %s113
  $region4: #{_lambda_.1} parent=0 // loop_header_branch
    %13 = sbr.rel (%p11) target = $region8
  $region5: #{_lambda_.1} parent=0 // loop_body
    %s15 = ssub.s32 %s10, 1
    %s16 = ssub.s32 %s10, 2
    %s17 = sadd.s32 %s10, 1
    %s18 = ssub.s32 %s10, %s17
    %p19 = scmp.eq.s32.totalorder %s18, 0
    %s21 = sadd.s32 %s20, 1
    %s22 = scalar_select %p19, %s20, %s21
    %p25 = pneg %p19
    %p26 = scmp.eq.s32.totalorder %s10, 1
    %p27 = por %p25, %p26
    %p28 = scmp.ne.s32.totalorder %s20, %s23
    %p29 = scmp.eq.s32.totalorder %s10, 0
    %p30 = por %p28, %p29
    %p31 = scmp.ne.s32.totalorder %s20, %s23
    %p32 = scmp.eq.s32.totalorder %s15, 1
    %p33 = por %p31, %p32
    %p34 = scmp.ne.s32.totalorder %s23, %s24
    %p35 = scmp.eq.s32.totalorder %s15, 0
    %p36 = por %p34, %p35
    %p37 = scmp.ne.s32.totalorder %s23, %s24
    %p38 = scmp.eq.s32.totalorder %s16, 1
    %p39 = por %p37, %p38
    %p41 = scmp.ne.s32.totalorder %s24, %s40
    %p42 = scmp.eq.s32.totalorder %s16, 0
    %p43 = por %p41, %p42
    %s45 = sadd.s32 %s44, 1
    %p48 = scmp.eq.s32.totalorder %s10, 1
    %p49 = scmp.ne.s32.totalorder %s44, %s46
    %p50 = scmp.eq.s32.totalorder %s10, 0
    %p51 = por %p49, %p50
    %p52 = scmp.ne.s32.totalorder %s44, %s46
    %p53 = scmp.eq.s32.totalorder %s15, 1
    %p54 = por %p52, %p53
    %p55 = scmp.ne.s32.totalorder %s46, %s47
    %p56 = scmp.eq.s32.totalorder %s15, 0
    %p57 = por %p55, %p56
    %p58 = scmp.ne.s32.totalorder %s46, %s47
    %p59 = scmp.eq.s32.totalorder %s16, 1
    %p60 = por %p58, %p59
    %p62 = scmp.ne.s32.totalorder %s47, %s61
    %p63 = scmp.eq.s32.totalorder %s16, 0
    %p64 = por %p62, %p63
    %s66 = sadd.s32 %s65, 1
    %p69 = scmp.eq.s32.totalorder %s10, 1
    %p70 = scmp.ne.s32.totalorder %s65, %s67
    %p71 = scmp.eq.s32.totalorder %s10, 0
    %p72 = por %p70, %p71
    %p73 = scmp.ne.s32.totalorder %s65, %s67
    %p74 = scmp.eq.s32.totalorder %s15, 1
    %p75 = por %p73, %p74
    %p76 = scmp.ne.s32.totalorder %s67, %s68
    %p77 = scmp.eq.s32.totalorder %s15, 0
    %p78 = por %p76, %p77
    %p79 = scmp.ne.s32.totalorder %s67, %s68
    %p80 = scmp.eq.s32.totalorder %s16, 1
    %p81 = por %p79, %p80
    %p83 = scmp.ne.s32.totalorder %s68, %s82
    %p84 = scmp.eq.s32.totalorder %s16, 0
    %p85 = por %p83, %p84
    %s87 = sadd.s32 %s86, 1
    %p90 = scmp.eq.s32.totalorder %s10, 1
    %p91 = scmp.ne.s32.totalorder %s86, %s88
    %p92 = scmp.eq.s32.totalorder %s10, 0
    %p93 = por %p91, %p92
    %p94 = scmp.ne.s32.totalorder %s86, %s88
    %p95 = scmp.eq.s32.totalorder %s15, 1
    %p96 = por %p94, %p95
    %p97 = scmp.ne.s32.totalorder %s88, %s89
    %p98 = scmp.eq.s32.totalorder %s15, 0
    %p99 = por %p97, %p98
    %p100 = scmp.ne.s32.totalorder %s88, %s89
    %p101 = scmp.eq.s32.totalorder %s16, 1
    %p102 = por %p100, %p101
    %p104 = scmp.ne.s32.totalorder %s89, %s103
    %p105 = scmp.eq.s32.totalorder %s16, 0
    %p106 = por %p104, %p105
    %s107 = ssub.s32 %s10, %s17
    %p108 = scmp.eq.s32.totalorder %s107, 0
    %s110 = sadd.s32 %s109, 1
    %s111 = scalar_select %p108, %s109, %s110
    %p114 = pneg %p108
    %p115 = scmp.eq.s32.totalorder %s10, 1
    %p116 = por %p114, %p115
    %p117 = scmp.ne.s32.totalorder %s109, %s112
    %p118 = scmp.eq.s32.totalorder %s10, 0
    %p119 = por %p117, %p118
    %p120 = scmp.ne.s32.totalorder %s109, %s112
    %p121 = scmp.eq.s32.totalorder %s15, 1
    %p122 = por %p120, %p121
    %p123 = scmp.ne.s32.totalorder %s112, %s113
    %p124 = scmp.eq.s32.totalorder %s15, 0
    %p125 = por %p123, %p124
    %p126 = scmp.ne.s32.totalorder %s112, %s113
    %p127 = scmp.eq.s32.totalorder %s16, 1
    %p128 = por %p126, %p127
    %p130 = scmp.ne.s32.totalorder %s113, %s129
    %p131 = scmp.eq.s32.totalorder %s16, 0
    %p132 = por %p130, %p131
    %p133 = scmp.le.s32.totalorder 1, %s10
    %p134 = scmp.lt.s32.totalorder %s10, 3
    %p135 = pnand %p133, %p134
    %p136 = pneg %p135
    // Predicated region
    $region9: #{_lambda_.1} parent=5 // pred_check
      _
    $region10: #{_lambda_.1} parent=5 // pred_check_branch
      %138 = sbr.rel (%p135) target = $region12
    $region11: #{_lambda_.1} parent=5 // pred_region
      %s139 = ssub.s32 %s10, 1
      // Predicated region
      $region13: #{_lambda_.1} parent=11 // pred_check
        %p140 = pneg %p57
      $region14: #{_lambda_.1} parent=11 // pred_check_branch
        %142 = sbr.rel (%p140) target = $region16
      $region15: #{_lambda_.1} parent=11 // pred_region
        _
      $region16: #{_lambda_.1} parent=11 // pred_fallthru
        _
      // Predicated region
      $region17: #{_lambda_.1} parent=11 // pred_check
        %p143 = pneg %p78
      $region18: #{_lambda_.1} parent=11 // pred_check_branch
        %145 = sbr.rel (%p143) target = $region20
      $region19: #{_lambda_.1} parent=11 // pred_region
        _
      $region20: #{_lambda_.1} parent=11 // pred_fallthru
        _
      // Predicated region
      $region21: #{_lambda_.1} parent=11 // pred_check
        %p146 = pneg %p99
      $region22: #{_lambda_.1} parent=11 // pred_check_branch
        %148 = sbr.rel (%p146) target = $region24
      $region23: #{_lambda_.1} parent=11 // pred_region
        _
      $region24: #{_lambda_.1} parent=11 // pred_fallthru
        _
    $region12: #{_lambda_.1} parent=5 // pred_fallthru
      _
    %p149 = scmp.lt.s32.totalorder %s10, 2
    // Predicated region
    $region25: #{_lambda_.1} parent=5 // pred_check
      %p150 = pneg %p149
    $region26: #{_lambda_.1} parent=5 // pred_check_branch
      %152 = sbr.rel (%p150) target = $region28
    $region27: #{_lambda_.1} parent=5 // pred_region
      // Predicated region
      $region29: #{_lambda_.1} parent=27 // pred_check
        %p153 = pneg %p30
      $region30: #{_lambda_.1} parent=27 // pred_check_branch
        %155 = sbr.rel (%p153) target = $region32
      $region31: #{_lambda_.1} parent=27 // pred_region
        %s156 = smul.u32 32, %s10
        %p157 = scmp.lt.s32.totalorder %s156, 63
        %s158 = scalar_select %p157, %s156, 63
        %s159 = smul.addr %s158, 8
        %s160 = scalar_lea.vmem %s0, %s159
        %s161 = smul.u32 32, %s10
      $region32: #{_lambda_.1} parent=27 // pred_fallthru
        _
    $region28: #{_lambda_.1} parent=5 // pred_fallthru
      _
    %p162 = scmp.le.s32.totalorder 1, %s10
    %p163 = scmp.lt.s32.totalorder %s10, 3
    %p164 = pnand %p162, %p163
    %p165 = pneg %p164
    // Predicated region
    $region33: #{_lambda_.1} parent=5 // pred_check
      _
    $region34: #{_lambda_.1} parent=5 // pred_check_branch
      %167 = sbr.rel (%p164) target = $region36
    $region35: #{_lambda_.1} parent=5 // pred_region
      %s168 = ssub.s32 %s10, 1
      %s169 = smul.u32 32, %s15
      %p170 = scmp.lt.s32.totalorder %s169, 63
      %s171 = scalar_select %p170, %s169, 63
      %s172 = smul.addr %s171, 8
      %s173 = scalar_lea.vmem %s0, %s172
      %p174 = pneg %p36
      %p175 = pneg %p33
      %p176 = pneg %p57
      %p177 = pneg %p54
      %p178 = pneg %p78
      %p179 = pneg %p75
      %p180 = pneg %p99
      %p181 = pneg %p96
      %p182 = pneg %p125
      %p183 = pneg %p122
      %s184 = smul.u32 32, %s15
      %p185 = scmp.lt.s32.totalorder %s184, 63
      %s186 = scalar_select %p185, %s184, 63
      %s187 = smul.addr %s186, 8
      %s188 = scalar_lea.vmem %s4, %s187
      %s189 = smul.u32 32, %s15
      %p190 = scmp.lt.s32.totalorder %s189, 63
      %s191 = scalar_select %p190, %s189, 63
      %s192 = smul.addr %s191, 8
      %s193 = scalar_lea.vmem %s0, %s192
      %s194 = smul.u32 32, %s15
      %s195 = smul.u32 32, %s15
      %p196 = scmp.lt.s32.totalorder %s195, 63
      %s197 = scalar_select %p196, %s195, 63
      %s198 = smul.addr %s197, 8
      %s199 = scalar_lea.vmem %s4, %s198
      %s200 = smul.u32 32, %s15
      %v201 = vld [vmem:[%s193] sm:$0xff]
      %v202 = vld [vmem:[%s193 + $0x8] sm:$0xff]
      %v203 = vld [vmem:[%s193 + $0x10] sm:$0xff]
      %v204 = vld [vmem:[%s193 + $0x18] sm:$0xff]
      %v205 = vld [vmem:[%s193 + $0x20] sm:$0xff]
      %v206 = vld [vmem:[%s193 + $0x28] sm:$0xff]
      %v207 = vld [vmem:[%s193 + $0x30] sm:$0xff]
      %v208 = vld [vmem:[%s193 + $0x38] sm:$0xff]
      %v209 = vld [vmem:[%s193 + $0x40] sm:$0xff]
      %v210 = vld [vmem:[%s193 + $0x48] sm:$0xff]
      %v211 = vld [vmem:[%s193 + $0x50] sm:$0xff]
      %v212 = vld [vmem:[%s193 + $0x58] sm:$0xff]
      %v213 = vld [vmem:[%s193 + $0x60] sm:$0xff]
      %v214 = vld [vmem:[%s193 + $0x68] sm:$0xff]
      %v215 = vld [vmem:[%s193 + $0x70] sm:$0xff]
      %v216 = vld [vmem:[%s193 + $0x78] sm:$0xff]
      %v217 = vld [vmem:[%s193 + $0x80] sm:$0xff]
      %v218 = vld [vmem:[%s193 + $0x88] sm:$0xff]
      %v219 = vld [vmem:[%s193 + $0x90] sm:$0xff]
      %v220 = vld [vmem:[%s193 + $0x98] sm:$0xff]
      %v221 = vld [vmem:[%s193 + $0xa0] sm:$0xff]
      %v222 = vld [vmem:[%s193 + $0xa8] sm:$0xff]
      %v223 = vld [vmem:[%s193 + $0xb0] sm:$0xff]
      %v224 = vld [vmem:[%s193 + $0xb8] sm:$0xff]
      %v225 = vld [vmem:[%s193 + $0xc0] sm:$0xff]
      %v226 = vld [vmem:[%s193 + $0xc8] sm:$0xff]
      %v227 = vld [vmem:[%s193 + $0xd0] sm:$0xff]
      %v228 = vld [vmem:[%s193 + $0xd8] sm:$0xff]
      %v229 = vld [vmem:[%s193 + $0xe0] sm:$0xff]
      %v230 = vld [vmem:[%s193 + $0xe8] sm:$0xff]
      %v231 = vld [vmem:[%s193 + $0xf0] sm:$0xff]
      %v232 = vld [vmem:[%s193 + $0xf8] sm:$0xff]
      %v233 = vld [vmem:[%s1] sm:$0xff]
      %v234 = vld [vmem:[%s1 + $0x8] sm:$0xff]
      %v235 = vld [vmem:[%s1 + $0x10] sm:$0xff]
      %v236 = vld [vmem:[%s1 + $0x18] sm:$0xff]
      %v237 = vld [vmem:[%s1 + $0x20] sm:$0xff]
      %v238 = vld [vmem:[%s1 + $0x28] sm:$0xff]
      %v239 = vld [vmem:[%s1 + $0x30] sm:$0xff]
      %v240 = vld [vmem:[%s1 + $0x38] sm:$0xff]
      %v241 = vld [vmem:[%s1 + $0x40] sm:$0xff]
      %v242 = vld [vmem:[%s1 + $0x48] sm:$0xff]
      %v243 = vld [vmem:[%s1 + $0x50] sm:$0xff]
      %v244 = vld [vmem:[%s1 + $0x58] sm:$0xff]
      %v245 = vld [vmem:[%s1 + $0x60] sm:$0xff]
      %v246 = vld [vmem:[%s1 + $0x68] sm:$0xff]
      %v247 = vld [vmem:[%s1 + $0x70] sm:$0xff]
      %v248 = vld [vmem:[%s1 + $0x78] sm:$0xff]
      %v249 = vld [vmem:[%s1 + $0x80] sm:$0xff]
      %v250 = vld [vmem:[%s1 + $0x88] sm:$0xff]
      %v251 = vld [vmem:[%s1 + $0x90] sm:$0xff]
      %v252 = vld [vmem:[%s1 + $0x98] sm:$0xff]
      %v253 = vld [vmem:[%s1 + $0xa0] sm:$0xff]
      %v254 = vld [vmem:[%s1 + $0xa8] sm:$0xff]
      %v255 = vld [vmem:[%s1 + $0xb0] sm:$0xff]
      %v256 = vld [vmem:[%s1 + $0xb8] sm:$0xff]
      %v257 = vld [vmem:[%s1 + $0xc0] sm:$0xff]
      %v258 = vld [vmem:[%s1 + $0xc8] sm:$0xff]
      %v259 = vld [vmem:[%s1 + $0xd0] sm:$0xff]
      %v260 = vld [vmem:[%s1 + $0xd8] sm:$0xff]
      %v261 = vld [vmem:[%s1 + $0xe0] sm:$0xff]
      %v262 = vld [vmem:[%s1 + $0xe8] sm:$0xff]
      %v263 = vld [vmem:[%s1 + $0xf0] sm:$0xff]
      %v264 = vld [vmem:[%s1 + $0xf8] sm:$0xff]
      %v265 = vld [vmem:[%s1 + $0x100] sm:$0xff]
      %v266 = vld [vmem:[%s1 + $0x108] sm:$0xff]
      %v267 = vld [vmem:[%s1 + $0x110] sm:$0xff]
      %v268 = vld [vmem:[%s1 + $0x118] sm:$0xff]
      %v269 = vld [vmem:[%s1 + $0x120] sm:$0xff]
      %v270 = vld [vmem:[%s1 + $0x128] sm:$0xff]
      %v271 = vld [vmem:[%s1 + $0x130] sm:$0xff]
      %v272 = vld [vmem:[%s1 + $0x138] sm:$0xff]
      %v273 = vld [vmem:[%s2] sm:$0xf]
      %v275 = vlaneseq
      %v276 = vshrl.u32 %v275, 7
      %v277 = vsub.s32 0, %v276
      %v278 = vrot.slane %v273, %v277
      %v279 = vlaneseq
      %v280 = vshrl.u32 %v279, 7
      %v281 = vsub.s32 1, %v280
      %v282 = vrot.slane %v273, %v281
      %v283 = vlaneseq
      %v284 = vshrl.u32 %v283, 7
      %v285 = vsub.s32 2, %v284
      %v286 = vrot.slane %v273, %v285
      %v287 = vlaneseq
      %v288 = vshrl.u32 %v287, 7
      %v289 = vsub.s32 3, %v288
      %v290 = vrot.slane %v273, %v289
      %vm295 = vcmask 654336
      %v297 = vsel %vm295, %v201, 0
      %v300 = vsel %vm295, %v202, 0
      %v303 = vsel %vm295, %v203, 0
      %v306 = vsel %vm295, %v204, 0
      %v309 = vsel %vm295, %v205, 0
      %v312 = vsel %vm295, %v206, 0
      %v315 = vsel %vm295, %v207, 0
      %v318 = vsel %vm295, %v208, 0
      %v321 = vsel %vm295, %v209, 0
      %v324 = vsel %vm295, %v210, 0
      %v327 = vsel %vm295, %v211, 0
      %v330 = vsel %vm295, %v212, 0
      %v333 = vsel %vm295, %v213, 0
      %v336 = vsel %vm295, %v214, 0
      %v339 = vsel %vm295, %v215, 0
      %v342 = vsel %vm295, %v216, 0
      %v345 = vsel %vm295, %v217, 0
      %v348 = vsel %vm295, %v218, 0
      %v351 = vsel %vm295, %v219, 0
      %v354 = vsel %vm295, %v220, 0
      %v357 = vsel %vm295, %v221, 0
      %v360 = vsel %vm295, %v222, 0
      %v363 = vsel %vm295, %v223, 0
      %v366 = vsel %vm295, %v224, 0
      %v369 = vsel %vm295, %v225, 0
      %v372 = vsel %vm295, %v226, 0
      %v375 = vsel %vm295, %v227, 0
      %v378 = vsel %vm295, %v228, 0
      %v381 = vsel %vm295, %v229, 0
      %v384 = vsel %vm295, %v230, 0
      %v387 = vsel %vm295, %v231, 0
      %v390 = vsel %vm295, %v232, 0
      %392 = vmatprep.subr.mxu0 0.0
      %393 = vmatpush1.msra.mxu0 0.0
      %394 = vmatprep.subr.mxu0 0.0
      %395 = vmatpush1.msra.mxu0 0.0
      %396 = vmatprep.subr.mxu0 0.0
      %397 = vmatpush1.msra.mxu0 0.0
      %398 = vmatprep.subr.mxu0 0.0
      %399 = vmatpush1.msra.mxu0 0.0
      %400 = vmatprep.subr.mxu0 0.0
      %401 = vmatpush1.msra.mxu0 0.0
      %402 = vmatprep.subr.mxu0 0.0
      %403 = vmatpush1.msra.mxu0 0.0
      %404 = vmatprep.subr.mxu0 %v270
      %405 = vmatpush1.msra.mxu0 %v269
      %406 = vmatprep.subr.mxu0 %v266
      %407 = vmatpush1.msra.mxu0 %v265
      %408 = vmatprep.subr.mxu0 %v262
      %409 = vmatpush1.msra.mxu0 %v261
      %410 = vmatprep.subr.mxu0 %v258
      %411 = vmatpush1.msra.mxu0 %v257
      %412 = vmatprep.subr.mxu0 %v254
      %413 = vmatpush1.msra.mxu0 %v253
      %414 = vmatprep.subr.mxu0 %v250
      %415 = vmatpush1.msra.mxu0 %v249
      %416 = vmatprep.subr.mxu0 %v246
      %417 = vmatpush1.msra.mxu0 %v245
      %418 = vmatprep.subr.mxu0 %v242
      %419 = vmatpush1.msra.mxu0 %v241
      %420 = vmatprep.subr.mxu0 %v238
      %421 = vmatpush1.msra.mxu0 %v237
      %422 = vmatprep.subr.mxu0 %v234
      %423 = vmatpush1.msra.mxu0 %v233
      %424 = vmatprep.subr.mxu0 0.0
      %425 = vmatpush2.msra.mxu0 0.0
      %426 = vmatprep.subr.mxu0 0.0
      %427 = vmatpush2.msra.mxu0 0.0
      %428 = vmatprep.subr.mxu0 0.0
      %429 = vmatpush2.msra.mxu0 0.0
      %430 = vmatprep.subr.mxu0 0.0
      %431 = vmatpush2.msra.mxu0 0.0
      %432 = vmatprep.subr.mxu0 0.0
      %433 = vmatpush2.msra.mxu0 0.0
      %434 = vmatprep.subr.mxu0 0.0
      %435 = vmatpush2.msra.mxu0 0.0
      %436 = vmatprep.subr.mxu0 0.0
      %437 = vmatpush2.msra.mxu0 0.0
      %438 = vmatprep.subr.mxu0 0.0
      %439 = vmatpush2.msra.mxu0 0.0
      %440 = vmatprep.subr.mxu0 0.0
      %441 = vmatpush2.msra.mxu0 0.0
      %442 = vmatprep.subr.mxu0 0.0
      %443 = vmatpush2.msra.mxu0 0.0
      %444 = vmatprep.subr.mxu0 0.0
      %445 = vmatpush2.msra.mxu0 0.0
      %446 = vmatprep.subr.mxu0 0.0
      %447 = vmatpush2.msra.mxu0 0.0
      %448 = vmatprep.subr.mxu0 0.0
      %449 = vmatpush2.msra.mxu0 0.0
      %450 = vmatprep.subr.mxu0 0.0
      %451 = vmatpush2.msra.mxu0 0.0
      %452 = vmatprep.subr.mxu0 0.0
      %453 = vmatpush2.msra.mxu0 0.0
      %454 = vmatprep.subr.mxu0 0.0
      %455 = vmatpush2.msra.mxu0 0.0
      %456 = vmatprep.mubr.f32.mxu0 0.0
      %457 = vmatmul.mubr.f32.gmra.mxu0 %v297
      %v458 = vpop.f32.mrf.mxu0
      %v459 = vadd.f32 %v278, %v458
      %v460 = vpop.f32.mrf.mxu0
      %v461 = vadd.f32 %v282, %v460
      %462 = vmatprep.mubr.f32.mxu0 0.0
      %463 = vmatmul.mubr.f32.gmra.mxu0 %v300
      %v464 = vpop.f32.mrf.mxu0
      %v465 = vadd.f32 %v278, %v464
      %v466 = vpop.f32.mrf.mxu0
      %v467 = vadd.f32 %v282, %v466
      %468 = vmatprep.mubr.f32.mxu0 0.0
      %469 = vmatmul.mubr.f32.gmra.mxu0 %v303
      %v470 = vpop.f32.mrf.mxu0
      %v471 = vadd.f32 %v278, %v470
      %v472 = vpop.f32.mrf.mxu0
      %v473 = vadd.f32 %v282, %v472
      %474 = vmatprep.mubr.f32.mxu0 0.0
      %475 = vmatmul.mubr.f32.gmra.mxu0 %v306
      %v476 = vpop.f32.mrf.mxu0
      %v477 = vadd.f32 %v278, %v476
      %v478 = vpop.f32.mrf.mxu0
      %v479 = vadd.f32 %v282, %v478
      %480 = vmatprep.mubr.f32.mxu0 0.0
      %481 = vmatmul.mubr.f32.gmra.mxu0 %v309
      %v482 = vpop.f32.mrf.mxu0
      %v483 = vadd.f32 %v278, %v482
      %v484 = vpop.f32.mrf.mxu0
      %v485 = vadd.f32 %v282, %v484
      %486 = vmatprep.mubr.f32.mxu0 0.0
      %487 = vmatmul.mubr.f32.gmra.mxu0 %v312
      %v488 = vpop.f32.mrf.mxu0
      %v489 = vadd.f32 %v278, %v488
      %v490 = vpop.f32.mrf.mxu0
      %v491 = vadd.f32 %v282, %v490
      %492 = vmatprep.mubr.f32.mxu0 0.0
      %493 = vmatmul.mubr.f32.gmra.mxu0 %v315
      %v494 = vpop.f32.mrf.mxu0
      %v495 = vadd.f32 %v278, %v494
      %v496 = vpop.f32.mrf.mxu0
      %v497 = vadd.f32 %v282, %v496
      %498 = vmatprep.mubr.f32.mxu0 0.0
      %499 = vmatmul.mubr.f32.gmra.mxu0 %v318
      %v500 = vpop.f32.mrf.mxu0
      %v501 = vadd.f32 %v278, %v500
      %v502 = vpop.f32.mrf.mxu0
      %v503 = vadd.f32 %v282, %v502
      %504 = vmatprep.mubr.f32.mxu0 0.0
      %505 = vmatmul.mubr.f32.gmra.mxu0 %v321
      %v506 = vpop.f32.mrf.mxu0
      %v507 = vadd.f32 %v278, %v506
      %v508 = vpop.f32.mrf.mxu0
      %v509 = vadd.f32 %v282, %v508
      %510 = vmatprep.mubr.f32.mxu0 0.0
      %511 = vmatmul.mubr.f32.gmra.mxu0 %v324
      %v512 = vpop.f32.mrf.mxu0
      %v513 = vadd.f32 %v278, %v512
      %v514 = vpop.f32.mrf.mxu0
      %v515 = vadd.f32 %v282, %v514
      %516 = vmatprep.mubr.f32.mxu0 0.0
      %517 = vmatmul.mubr.f32.gmra.mxu0 %v327
      %v518 = vpop.f32.mrf.mxu0
      %v519 = vadd.f32 %v278, %v518
      %v520 = vpop.f32.mrf.mxu0
      %v521 = vadd.f32 %v282, %v520
      %522 = vmatprep.mubr.f32.mxu0 0.0
      %523 = vmatmul.mubr.f32.gmra.mxu0 %v330
      %v524 = vpop.f32.mrf.mxu0
      %v525 = vadd.f32 %v278, %v524
      %v526 = vpop.f32.mrf.mxu0
      %v527 = vadd.f32 %v282, %v526
      %528 = vmatprep.mubr.f32.mxu0 0.0
      %529 = vmatmul.mubr.f32.gmra.mxu0 %v333
      %v530 = vpop.f32.mrf.mxu0
      %v531 = vadd.f32 %v278, %v530
      %v532 = vpop.f32.mrf.mxu0
      %v533 = vadd.f32 %v282, %v532
      %534 = vmatprep.mubr.f32.mxu0 0.0
      %535 = vmatmul.mubr.f32.gmra.mxu0 %v336
      %v536 = vpop.f32.mrf.mxu0
      %v537 = vadd.f32 %v278, %v536
      %v538 = vpop.f32.mrf.mxu0
      %v539 = vadd.f32 %v282, %v538
      %540 = vmatprep.mubr.f32.mxu0 0.0
      %541 = vmatmul.mubr.f32.gmra.mxu0 %v339
      %v542 = vpop.f32.mrf.mxu0
      %v543 = vadd.f32 %v278, %v542
      %v544 = vpop.f32.mrf.mxu0
      %v545 = vadd.f32 %v282, %v544
      %546 = vmatprep.mubr.f32.mxu0 0.0
      %547 = vmatmul.mubr.f32.gmra.mxu0 %v342
      %v548 = vpop.f32.mrf.mxu0
      %v549 = vadd.f32 %v278, %v548
      %v550 = vpop.f32.mrf.mxu0
      %v551 = vadd.f32 %v282, %v550
      %552 = vmatprep.mubr.f32.mxu0 0.0
      %553 = vmatmul.mubr.f32.gmra.mxu0 %v345
      %v554 = vpop.f32.mrf.mxu0
      %v555 = vadd.f32 %v278, %v554
      %v556 = vpop.f32.mrf.mxu0
      %v557 = vadd.f32 %v282, %v556
      %558 = vmatprep.mubr.f32.mxu0 0.0
      %559 = vmatmul.mubr.f32.gmra.mxu0 %v348
      %v560 = vpop.f32.mrf.mxu0
      %v561 = vadd.f32 %v278, %v560
      %v562 = vpop.f32.mrf.mxu0
      %v563 = vadd.f32 %v282, %v562
      %564 = vmatprep.mubr.f32.mxu0 0.0
      %565 = vmatmul.mubr.f32.gmra.mxu0 %v351
      %v566 = vpop.f32.mrf.mxu0
      %v567 = vadd.f32 %v278, %v566
      %v568 = vpop.f32.mrf.mxu0
      %v569 = vadd.f32 %v282, %v568
      %570 = vmatprep.mubr.f32.mxu0 0.0
      %571 = vmatmul.mubr.f32.gmra.mxu0 %v354
      %v572 = vpop.f32.mrf.mxu0
      %v573 = vadd.f32 %v278, %v572
      %v574 = vpop.f32.mrf.mxu0
      %v575 = vadd.f32 %v282, %v574
      %576 = vmatprep.mubr.f32.mxu0 0.0
      %577 = vmatmul.mubr.f32.gmra.mxu0 %v357
      %v578 = vpop.f32.mrf.mxu0
      %v579 = vadd.f32 %v278, %v578
      %v580 = vpop.f32.mrf.mxu0
      %v581 = vadd.f32 %v282, %v580
      %582 = vmatprep.mubr.f32.mxu0 0.0
      %583 = vmatmul.mubr.f32.gmra.mxu0 %v360
      %v584 = vpop.f32.mrf.mxu0
      %v585 = vadd.f32 %v278, %v584
      %v586 = vpop.f32.mrf.mxu0
      %v587 = vadd.f32 %v282, %v586
      %588 = vmatprep.mubr.f32.mxu0 0.0
      %589 = vmatmul.mubr.f32.gmra.mxu0 %v363
      %v590 = vpop.f32.mrf.mxu0
      %v591 = vadd.f32 %v278, %v590
      %v592 = vpop.f32.mrf.mxu0
      %v593 = vadd.f32 %v282, %v592
      %594 = vmatprep.mubr.f32.mxu0 0.0
      %595 = vmatmul.mubr.f32.gmra.mxu0 %v366
      %v596 = vpop.f32.mrf.mxu0
      %v597 = vadd.f32 %v278, %v596
      %v598 = vpop.f32.mrf.mxu0
      %v599 = vadd.f32 %v282, %v598
      %600 = vmatprep.mubr.f32.mxu0 0.0
      %601 = vmatmul.mubr.f32.gmra.mxu0 %v369
      %v602 = vpop.f32.mrf.mxu0
      %v603 = vadd.f32 %v278, %v602
      %v604 = vpop.f32.mrf.mxu0
      %v605 = vadd.f32 %v282, %v604
      %606 = vmatprep.mubr.f32.mxu0 0.0
      %607 = vmatmul.mubr.f32.gmra.mxu0 %v372
      %v608 = vpop.f32.mrf.mxu0
      %v609 = vadd.f32 %v278, %v608
      %v610 = vpop.f32.mrf.mxu0
      %v611 = vadd.f32 %v282, %v610
      %612 = vmatprep.mubr.f32.mxu0 0.0
      %613 = vmatmul.mubr.f32.gmra.mxu0 %v375
      %v614 = vpop.f32.mrf.mxu0
      %v615 = vadd.f32 %v278, %v614
      %v616 = vpop.f32.mrf.mxu0
      %v617 = vadd.f32 %v282, %v616
      %618 = vmatprep.mubr.f32.mxu0 0.0
      %619 = vmatmul.mubr.f32.gmra.mxu0 %v378
      %v620 = vpop.f32.mrf.mxu0
      %v621 = vadd.f32 %v278, %v620
      %v622 = vpop.f32.mrf.mxu0
      %v623 = vadd.f32 %v282, %v622
      %624 = vmatprep.mubr.f32.mxu0 0.0
      %625 = vmatmul.mubr.f32.gmra.mxu0 %v381
      %v626 = vpop.f32.mrf.mxu0
      %v627 = vadd.f32 %v278, %v626
      %v628 = vpop.f32.mrf.mxu0
      %v629 = vadd.f32 %v282, %v628
      %630 = vmatprep.mubr.f32.mxu0 0.0
      %631 = vmatmul.mubr.f32.gmra.mxu0 %v384
      %v632 = vpop.f32.mrf.mxu0
      %v633 = vadd.f32 %v278, %v632
      %v634 = vpop.f32.mrf.mxu0
      %v635 = vadd.f32 %v282, %v634
      %636 = vmatprep.mubr.f32.mxu0 0.0
      %637 = vmatmul.mubr.f32.gmra.mxu0 %v387
      %v638 = vpop.f32.mrf.mxu0
      %v639 = vadd.f32 %v278, %v638
      %v640 = vpop.f32.mrf.mxu0
      %v641 = vadd.f32 %v282, %v640
      %642 = vmatprep.mubr.f32.mxu0 0.0
      %643 = vmatmul.mubr.f32.gmra.mxu0 %v390
      %v644 = vpop.f32.mrf.mxu0
      %v645 = vadd.f32 %v278, %v644
      %v646 = vpop.f32.mrf.mxu0
      %v647 = vadd.f32 %v282, %v646
      %648 = vdwg.mxu0
      %649 = vmatprep.subr.mxu0 0.0
      %650 = vmatpush1.msra.mxu0 0.0
      %651 = vmatprep.subr.mxu0 0.0
      %652 = vmatpush1.msra.mxu0 0.0
      %653 = vmatprep.subr.mxu0 0.0
      %654 = vmatpush1.msra.mxu0 0.0
      %655 = vmatprep.subr.mxu0 0.0
      %656 = vmatpush1.msra.mxu0 0.0
      %657 = vmatprep.subr.mxu0 0.0
      %658 = vmatpush1.msra.mxu0 0.0
      %659 = vmatprep.subr.mxu0 0.0
      %660 = vmatpush1.msra.mxu0 0.0
      %661 = vmatprep.subr.mxu0 %v272
      %662 = vmatpush1.msra.mxu0 %v271
      %663 = vmatprep.subr.mxu0 %v268
      %664 = vmatpush1.msra.mxu0 %v267
      %665 = vmatprep.subr.mxu0 %v264
      %666 = vmatpush1.msra.mxu0 %v263
      %667 = vmatprep.subr.mxu0 %v260
      %668 = vmatpush1.msra.mxu0 %v259
      %669 = vmatprep.subr.mxu0 %v256
      %670 = vmatpush1.msra.mxu0 %v255
      %671 = vmatprep.subr.mxu0 %v252
      %672 = vmatpush1.msra.mxu0 %v251
      %673 = vmatprep.subr.mxu0 %v248
      %674 = vmatpush1.msra.mxu0 %v247
      %675 = vmatprep.subr.mxu0 %v244
      %676 = vmatpush1.msra.mxu0 %v243
      %677 = vmatprep.subr.mxu0 %v240
      %678 = vmatpush1.msra.mxu0 %v239
      %679 = vmatprep.subr.mxu0 %v236
      %680 = vmatpush1.msra.mxu0 %v235
      %681 = vmatprep.subr.mxu0 0.0
      %682 = vmatpush2.msra.mxu0 0.0
      %683 = vmatprep.subr.mxu0 0.0
      %684 = vmatpush2.msra.mxu0 0.0
      %685 = vmatprep.subr.mxu0 0.0
      %686 = vmatpush2.msra.mxu0 0.0
      %687 = vmatprep.subr.mxu0 0.0
      %688 = vmatpush2.msra.mxu0 0.0
      %689 = vmatprep.subr.mxu0 0.0
      %690 = vmatpush2.msra.mxu0 0.0
      %691 = vmatprep.subr.mxu0 0.0
      %692 = vmatpush2.msra.mxu0 0.0
      %693 = vmatprep.subr.mxu0 0.0
      %694 = vmatpush2.msra.mxu0 0.0
      %695 = vmatprep.subr.mxu0 0.0
      %696 = vmatpush2.msra.mxu0 0.0
      %697 = vmatprep.subr.mxu0 0.0
      %698 = vmatpush2.msra.mxu0 0.0
      %699 = vmatprep.subr.mxu0 0.0
      %700 = vmatpush2.msra.mxu0 0.0
      %701 = vmatprep.subr.mxu0 0.0
      %702 = vmatpush2.msra.mxu0 0.0
      %703 = vmatprep.subr.mxu0 0.0
      %704 = vmatpush2.msra.mxu0 0.0
      %705 = vmatprep.subr.mxu0 0.0
      %706 = vmatpush2.msra.mxu0 0.0
      %707 = vmatprep.subr.mxu0 0.0
      %708 = vmatpush2.msra.mxu0 0.0
      %709 = vmatprep.subr.mxu0 0.0
      %710 = vmatpush2.msra.mxu0 0.0
      %711 = vmatprep.subr.mxu0 0.0
      %712 = vmatpush2.msra.mxu0 0.0
      %713 = vmatprep.mubr.f32.mxu0 0.0
      %714 = vmatmul.mubr.f32.gmra.mxu0 %v297
      %v715 = vpop.f32.mrf.mxu0
      %v716 = vadd.f32 %v286, %v715
      %v717 = vpop.f32.mrf.mxu0
      %v718 = vadd.f32 %v290, %v717
      %719 = vmatprep.mubr.f32.mxu0 0.0
      %720 = vmatmul.mubr.f32.gmra.mxu0 %v300
      %v721 = vpop.f32.mrf.mxu0
      %v722 = vadd.f32 %v286, %v721
      %v723 = vpop.f32.mrf.mxu0
      %v724 = vadd.f32 %v290, %v723
      %725 = vmatprep.mubr.f32.mxu0 0.0
      %726 = vmatmul.mubr.f32.gmra.mxu0 %v303
      %v727 = vpop.f32.mrf.mxu0
      %v728 = vadd.f32 %v286, %v727
      %v729 = vpop.f32.mrf.mxu0
      %v730 = vadd.f32 %v290, %v729
      %731 = vmatprep.mubr.f32.mxu0 0.0
      %732 = vmatmul.mubr.f32.gmra.mxu0 %v306
      %v733 = vpop.f32.mrf.mxu0
      %v734 = vadd.f32 %v286, %v733
      %v735 = vpop.f32.mrf.mxu0
      %v736 = vadd.f32 %v290, %v735
      %737 = vmatprep.mubr.f32.mxu0 0.0
      %738 = vmatmul.mubr.f32.gmra.mxu0 %v309
      %v739 = vpop.f32.mrf.mxu0
      %v740 = vadd.f32 %v286, %v739
      %v741 = vpop.f32.mrf.mxu0
      %v742 = vadd.f32 %v290, %v741
      %743 = vmatprep.mubr.f32.mxu0 0.0
      %744 = vmatmul.mubr.f32.gmra.mxu0 %v312
      %v745 = vpop.f32.mrf.mxu0
      %v746 = vadd.f32 %v286, %v745
      %v747 = vpop.f32.mrf.mxu0
      %v748 = vadd.f32 %v290, %v747
      %749 = vmatprep.mubr.f32.mxu0 0.0
      %750 = vmatmul.mubr.f32.gmra.mxu0 %v315
      %v751 = vpop.f32.mrf.mxu0
      %v752 = vadd.f32 %v286, %v751
      %v753 = vpop.f32.mrf.mxu0
      %v754 = vadd.f32 %v290, %v753
      %755 = vmatprep.mubr.f32.mxu0 0.0
      %756 = vmatmul.mubr.f32.gmra.mxu0 %v318
      %v757 = vpop.f32.mrf.mxu0
      %v758 = vadd.f32 %v286, %v757
      %v759 = vpop.f32.mrf.mxu0
      %v760 = vadd.f32 %v290, %v759
      %761 = vmatprep.mubr.f32.mxu0 0.0
      %762 = vmatmul.mubr.f32.gmra.mxu0 %v321
      %v763 = vpop.f32.mrf.mxu0
      %v764 = vadd.f32 %v286, %v763
      %v765 = vpop.f32.mrf.mxu0
      %v766 = vadd.f32 %v290, %v765
      %767 = vmatprep.mubr.f32.mxu0 0.0
      %768 = vmatmul.mubr.f32.gmra.mxu0 %v324
      %v769 = vpop.f32.mrf.mxu0
      %v770 = vadd.f32 %v286, %v769
      %v771 = vpop.f32.mrf.mxu0
      %v772 = vadd.f32 %v290, %v771
      %773 = vmatprep.mubr.f32.mxu0 0.0
      %774 = vmatmul.mubr.f32.gmra.mxu0 %v327
      %v775 = vpop.f32.mrf.mxu0
      %v776 = vadd.f32 %v286, %v775
      %v777 = vpop.f32.mrf.mxu0
      %v778 = vadd.f32 %v290, %v777
      %779 = vmatprep.mubr.f32.mxu0 0.0
      %780 = vmatmul.mubr.f32.gmra.mxu0 %v330
      %v781 = vpop.f32.mrf.mxu0
      %v782 = vadd.f32 %v286, %v781
      %v783 = vpop.f32.mrf.mxu0
      %v784 = vadd.f32 %v290, %v783
      %785 = vmatprep.mubr.f32.mxu0 0.0
      %786 = vmatmul.mubr.f32.gmra.mxu0 %v333
      %v787 = vpop.f32.mrf.mxu0
      %v788 = vadd.f32 %v286, %v787
      %v789 = vpop.f32.mrf.mxu0
      %v790 = vadd.f32 %v290, %v789
      %791 = vmatprep.mubr.f32.mxu0 0.0
      %792 = vmatmul.mubr.f32.gmra.mxu0 %v336
      %v793 = vpop.f32.mrf.mxu0
      %v794 = vadd.f32 %v286, %v793
      %v795 = vpop.f32.mrf.mxu0
      %v796 = vadd.f32 %v290, %v795
      %797 = vmatprep.mubr.f32.mxu0 0.0
      %798 = vmatmul.mubr.f32.gmra.mxu0 %v339
      %v799 = vpop.f32.mrf.mxu0
      %v800 = vadd.f32 %v286, %v799
      %v801 = vpop.f32.mrf.mxu0
      %v802 = vadd.f32 %v290, %v801
      %803 = vmatprep.mubr.f32.mxu0 0.0
      %804 = vmatmul.mubr.f32.gmra.mxu0 %v342
      %v805 = vpop.f32.mrf.mxu0
      %v806 = vadd.f32 %v286, %v805
      %v807 = vpop.f32.mrf.mxu0
      %v808 = vadd.f32 %v290, %v807
      %809 = vmatprep.mubr.f32.mxu0 0.0
      %810 = vmatmul.mubr.f32.gmra.mxu0 %v345
      %v811 = vpop.f32.mrf.mxu0
      %v812 = vadd.f32 %v286, %v811
      %v813 = vpop.f32.mrf.mxu0
      %v814 = vadd.f32 %v290, %v813
      %815 = vmatprep.mubr.f32.mxu0 0.0
      %816 = vmatmul.mubr.f32.gmra.mxu0 %v348
      %v817 = vpop.f32.mrf.mxu0
      %v818 = vadd.f32 %v286, %v817
      %v819 = vpop.f32.mrf.mxu0
      %v820 = vadd.f32 %v290, %v819
      %821 = vmatprep.mubr.f32.mxu0 0.0
      %822 = vmatmul.mubr.f32.gmra.mxu0 %v351
      %v823 = vpop.f32.mrf.mxu0
      %v824 = vadd.f32 %v286, %v823
      %v825 = vpop.f32.mrf.mxu0
      %v826 = vadd.f32 %v290, %v825
      %827 = vmatprep.mubr.f32.mxu0 0.0
      %828 = vmatmul.mubr.f32.gmra.mxu0 %v354
      %v829 = vpop.f32.mrf.mxu0
      %v830 = vadd.f32 %v286, %v829
      %v831 = vpop.f32.mrf.mxu0
      %v832 = vadd.f32 %v290, %v831
      %833 = vmatprep.mubr.f32.mxu0 0.0
      %834 = vmatmul.mubr.f32.gmra.mxu0 %v357
      %v835 = vpop.f32.mrf.mxu0
      %v836 = vadd.f32 %v286, %v835
      %v837 = vpop.f32.mrf.mxu0
      %v838 = vadd.f32 %v290, %v837
      %839 = vmatprep.mubr.f32.mxu0 0.0
      %840 = vmatmul.mubr.f32.gmra.mxu0 %v360
      %v841 = vpop.f32.mrf.mxu0
      %v842 = vadd.f32 %v286, %v841
      %v843 = vpop.f32.mrf.mxu0
      %v844 = vadd.f32 %v290, %v843
      %845 = vmatprep.mubr.f32.mxu0 0.0
      %846 = vmatmul.mubr.f32.gmra.mxu0 %v363
      %v847 = vpop.f32.mrf.mxu0
      %v848 = vadd.f32 %v286, %v847
      %v849 = vpop.f32.mrf.mxu0
      %v850 = vadd.f32 %v290, %v849
      %851 = vmatprep.mubr.f32.mxu0 0.0
      %852 = vmatmul.mubr.f32.gmra.mxu0 %v366
      %v853 = vpop.f32.mrf.mxu0
      %v854 = vadd.f32 %v286, %v853
      %v855 = vpop.f32.mrf.mxu0
      %v856 = vadd.f32 %v290, %v855
      %857 = vmatprep.mubr.f32.mxu0 0.0
      %858 = vmatmul.mubr.f32.gmra.mxu0 %v369
      %v859 = vpop.f32.mrf.mxu0
      %v860 = vadd.f32 %v286, %v859
      %v861 = vpop.f32.mrf.mxu0
      %v862 = vadd.f32 %v290, %v861
      %863 = vmatprep.mubr.f32.mxu0 0.0
      %864 = vmatmul.mubr.f32.gmra.mxu0 %v372
      %v865 = vpop.f32.mrf.mxu0
      %v866 = vadd.f32 %v286, %v865
      %v867 = vpop.f32.mrf.mxu0
      %v868 = vadd.f32 %v290, %v867
      %869 = vmatprep.mubr.f32.mxu0 0.0
      %870 = vmatmul.mubr.f32.gmra.mxu0 %v375
      %v871 = vpop.f32.mrf.mxu0
      %v872 = vadd.f32 %v286, %v871
      %v873 = vpop.f32.mrf.mxu0
      %v874 = vadd.f32 %v290, %v873
      %875 = vmatprep.mubr.f32.mxu0 0.0
      %876 = vmatmul.mubr.f32.gmra.mxu0 %v378
      %v877 = vpop.f32.mrf.mxu0
      %v878 = vadd.f32 %v286, %v877
      %v879 = vpop.f32.mrf.mxu0
      %v880 = vadd.f32 %v290, %v879
      %881 = vmatprep.mubr.f32.mxu0 0.0
      %882 = vmatmul.mubr.f32.gmra.mxu0 %v381
      %v883 = vpop.f32.mrf.mxu0
      %v884 = vadd.f32 %v286, %v883
      %v885 = vpop.f32.mrf.mxu0
      %v886 = vadd.f32 %v290, %v885
      %887 = vmatprep.mubr.f32.mxu0 0.0
      %888 = vmatmul.mubr.f32.gmra.mxu0 %v384
      %v889 = vpop.f32.mrf.mxu0
      %v890 = vadd.f32 %v286, %v889
      %v891 = vpop.f32.mrf.mxu0
      %v892 = vadd.f32 %v290, %v891
      %893 = vmatprep.mubr.f32.mxu0 0.0
      %894 = vmatmul.mubr.f32.gmra.mxu0 %v387
      %v895 = vpop.f32.mrf.mxu0
      %v896 = vadd.f32 %v286, %v895
      %v897 = vpop.f32.mrf.mxu0
      %v898 = vadd.f32 %v290, %v897
      %899 = vmatprep.mubr.f32.mxu0 0.0
      %900 = vmatmul.mubr.f32.gmra.mxu0 %v390
      %v901 = vpop.f32.mrf.mxu0
      %v902 = vadd.f32 %v286, %v901
      %v903 = vpop.f32.mrf.mxu0
      %v904 = vadd.f32 %v290, %v903
      %905 = vdwg.mxu0
      %v906 = vmax.f32 %v459, 0.0
      %v907 = vmax.f32 %v461, 0.0
      %v908 = vmax.f32 %v716, 0.0
      %v909 = vmax.f32 %v718, 0.0
      %v910 = vmax.f32 %v465, 0.0
      %v911 = vmax.f32 %v467, 0.0
      %v912 = vmax.f32 %v722, 0.0
      %v913 = vmax.f32 %v724, 0.0
      %v914 = vmax.f32 %v471, 0.0
      %v915 = vmax.f32 %v473, 0.0
      %v916 = vmax.f32 %v728, 0.0
      %v917 = vmax.f32 %v730, 0.0
      %v918 = vmax.f32 %v477, 0.0
      %v919 = vmax.f32 %v479, 0.0
      %v920 = vmax.f32 %v734, 0.0
      %v921 = vmax.f32 %v736, 0.0
      %v922 = vmax.f32 %v483, 0.0
      %v923 = vmax.f32 %v485, 0.0
      %v924 = vmax.f32 %v740, 0.0
      %v925 = vmax.f32 %v742, 0.0
      %v926 = vmax.f32 %v489, 0.0
      %v927 = vmax.f32 %v491, 0.0
      %v928 = vmax.f32 %v746, 0.0
      %v929 = vmax.f32 %v748, 0.0
      %v930 = vmax.f32 %v495, 0.0
      %v931 = vmax.f32 %v497, 0.0
      %v932 = vmax.f32 %v752, 0.0
      %v933 = vmax.f32 %v754, 0.0
      %v934 = vmax.f32 %v501, 0.0
      %v935 = vmax.f32 %v503, 0.0
      %v936 = vmax.f32 %v758, 0.0
      %v937 = vmax.f32 %v760, 0.0
      %v938 = vmax.f32 %v507, 0.0
      %v939 = vmax.f32 %v509, 0.0
      %v940 = vmax.f32 %v764, 0.0
      %v941 = vmax.f32 %v766, 0.0
      %v942 = vmax.f32 %v513, 0.0
      %v943 = vmax.f32 %v515, 0.0
      %v944 = vmax.f32 %v770, 0.0
      %v945 = vmax.f32 %v772, 0.0
      %v946 = vmax.f32 %v519, 0.0
      %v947 = vmax.f32 %v521, 0.0
      %v948 = vmax.f32 %v776, 0.0
      %v949 = vmax.f32 %v778, 0.0
      %v950 = vmax.f32 %v525, 0.0
      %v951 = vmax.f32 %v527, 0.0
      %v952 = vmax.f32 %v782, 0.0
      %v953 = vmax.f32 %v784, 0.0
      %v954 = vmax.f32 %v531, 0.0
      %v955 = vmax.f32 %v533, 0.0
      %v956 = vmax.f32 %v788, 0.0
      %v957 = vmax.f32 %v790, 0.0
      %v958 = vmax.f32 %v537, 0.0
      %v959 = vmax.f32 %v539, 0.0
      %v960 = vmax.f32 %v794, 0.0
      %v961 = vmax.f32 %v796, 0.0
      %v962 = vmax.f32 %v543, 0.0
      %v963 = vmax.f32 %v545, 0.0
      %v964 = vmax.f32 %v800, 0.0
      %v965 = vmax.f32 %v802, 0.0
      %v966 = vmax.f32 %v549, 0.0
      %v967 = vmax.f32 %v551, 0.0
      %v968 = vmax.f32 %v806, 0.0
      %v969 = vmax.f32 %v808, 0.0
      %v970 = vmax.f32 %v555, 0.0
      %v971 = vmax.f32 %v557, 0.0
      %v972 = vmax.f32 %v812, 0.0
      %v973 = vmax.f32 %v814, 0.0
      %v974 = vmax.f32 %v561, 0.0
      %v975 = vmax.f32 %v563, 0.0
      %v976 = vmax.f32 %v818, 0.0
      %v977 = vmax.f32 %v820, 0.0
      %v978 = vmax.f32 %v567, 0.0
      %v979 = vmax.f32 %v569, 0.0
      %v980 = vmax.f32 %v824, 0.0
      %v981 = vmax.f32 %v826, 0.0
      %v982 = vmax.f32 %v573, 0.0
      %v983 = vmax.f32 %v575, 0.0
      %v984 = vmax.f32 %v830, 0.0
      %v985 = vmax.f32 %v832, 0.0
      %v986 = vmax.f32 %v579, 0.0
      %v987 = vmax.f32 %v581, 0.0
      %v988 = vmax.f32 %v836, 0.0
      %v989 = vmax.f32 %v838, 0.0
      %v990 = vmax.f32 %v585, 0.0
      %v991 = vmax.f32 %v587, 0.0
      %v992 = vmax.f32 %v842, 0.0
      %v993 = vmax.f32 %v844, 0.0
      %v994 = vmax.f32 %v591, 0.0
      %v995 = vmax.f32 %v593, 0.0
      %v996 = vmax.f32 %v848, 0.0
      %v997 = vmax.f32 %v850, 0.0
      %v998 = vmax.f32 %v597, 0.0
      %v999 = vmax.f32 %v599, 0.0
      %v1000 = vmax.f32 %v854, 0.0
      %v1001 = vmax.f32 %v856, 0.0
      %v1002 = vmax.f32 %v603, 0.0
      %v1003 = vmax.f32 %v605, 0.0
      %v1004 = vmax.f32 %v860, 0.0
      %v1005 = vmax.f32 %v862, 0.0
      %v1006 = vmax.f32 %v609, 0.0
      %v1007 = vmax.f32 %v611, 0.0
      %v1008 = vmax.f32 %v866, 0.0
      %v1009 = vmax.f32 %v868, 0.0
      %v1010 = vmax.f32 %v615, 0.0
      %v1011 = vmax.f32 %v617, 0.0
      %v1012 = vmax.f32 %v872, 0.0
      %v1013 = vmax.f32 %v874, 0.0
      %v1014 = vmax.f32 %v621, 0.0
      %v1015 = vmax.f32 %v623, 0.0
      %v1016 = vmax.f32 %v878, 0.0
      %v1017 = vmax.f32 %v880, 0.0
      %v1018 = vmax.f32 %v627, 0.0
      %v1019 = vmax.f32 %v629, 0.0
      %v1020 = vmax.f32 %v884, 0.0
      %v1021 = vmax.f32 %v886, 0.0
      %v1022 = vmax.f32 %v633, 0.0
      %v1023 = vmax.f32 %v635, 0.0
      %v1024 = vmax.f32 %v890, 0.0
      %v1025 = vmax.f32 %v892, 0.0
      %v1026 = vmax.f32 %v639, 0.0
      %v1027 = vmax.f32 %v641, 0.0
      %v1028 = vmax.f32 %v896, 0.0
      %v1029 = vmax.f32 %v898, 0.0
      %v1030 = vmax.f32 %v645, 0.0
      %v1031 = vmax.f32 %v647, 0.0
      %v1032 = vmax.f32 %v902, 0.0
      %v1033 = vmax.f32 %v904, 0.0
      %v1034 = vld [vmem:[%s3] sm:$0xff]
      %v1035 = vld [vmem:[%s3 + $0x8] sm:$0xff]
      %v1036 = vld [vmem:[%s3 + $0x10] sm:$0xff]
      %v1037 = vld [vmem:[%s3 + $0x18] sm:$0xff]
      %v1038 = vld [vmem:[%s3 + $0x20] sm:$0xff]
      %v1039 = vld [vmem:[%s3 + $0x28] sm:$0xff]
      %v1040 = vld [vmem:[%s3 + $0x30] sm:$0xff]
      %v1041 = vld [vmem:[%s3 + $0x38] sm:$0xff]
      %v1042 = vld [vmem:[%s3 + $0x40] sm:$0xff]
      %v1043 = vld [vmem:[%s3 + $0x48] sm:$0xff]
      %v1044 = vld [vmem:[%s3 + $0x50] sm:$0xff]
      %v1045 = vld [vmem:[%s3 + $0x58] sm:$0xff]
      %v1046 = vld [vmem:[%s3 + $0x60] sm:$0xff]
      %v1047 = vld [vmem:[%s3 + $0x68] sm:$0xff]
      %v1048 = vld [vmem:[%s3 + $0x70] sm:$0xff]
      %v1049 = vld [vmem:[%s3 + $0x78] sm:$0xff]
      %v1050 = vld [vmem:[%s3 + $0x80] sm:$0xff]
      %v1051 = vld [vmem:[%s3 + $0x88] sm:$0xff]
      %v1052 = vld [vmem:[%s3 + $0x90] sm:$0xff]
      %v1053 = vld [vmem:[%s3 + $0x98] sm:$0xff]
      %v1054 = vld [vmem:[%s3 + $0xa0] sm:$0xff]
      %v1055 = vld [vmem:[%s3 + $0xa8] sm:$0xff]
      %v1056 = vld [vmem:[%s3 + $0xb0] sm:$0xff]
      %v1057 = vld [vmem:[%s3 + $0xb8] sm:$0xff]
      %v1058 = vld [vmem:[%s3 + $0xc0] sm:$0xff]
      %v1059 = vld [vmem:[%s3 + $0xc8] sm:$0xff]
      %v1060 = vld [vmem:[%s3 + $0xd0] sm:$0xff]
      %v1061 = vld [vmem:[%s3 + $0xd8] sm:$0xff]
      %v1062 = vld [vmem:[%s3 + $0xe0] sm:$0xff]
      %v1063 = vld [vmem:[%s3 + $0xe8] sm:$0xff]
      %v1064 = vld [vmem:[%s3 + $0xf0] sm:$0xff]
      %v1065 = vld [vmem:[%s3 + $0xf8] sm:$0xff]
      %v1066 = vld [vmem:[%s3 + $0x100] sm:$0xff]
      %v1067 = vld [vmem:[%s3 + $0x108] sm:$0xff]
      %v1068 = vld [vmem:[%s3 + $0x110] sm:$0xff]
      %v1069 = vld [vmem:[%s3 + $0x118] sm:$0xff]
      %v1070 = vld [vmem:[%s3 + $0x120] sm:$0xff]
      %v1071 = vld [vmem:[%s3 + $0x128] sm:$0xff]
      %v1072 = vld [vmem:[%s3 + $0x130] sm:$0xff]
      %v1073 = vld [vmem:[%s3 + $0x138] sm:$0xff]
      %v1074 = vld [vmem:[%s3 + $0x140] sm:$0xff]
      %v1075 = vld [vmem:[%s3 + $0x148] sm:$0xff]
      %v1076 = vld [vmem:[%s3 + $0x150] sm:$0xff]
      %v1077 = vld [vmem:[%s3 + $0x158] sm:$0xff]
      %v1078 = vld [vmem:[%s3 + $0x160] sm:$0xff]
      %v1079 = vld [vmem:[%s3 + $0x168] sm:$0xff]
      %v1080 = vld [vmem:[%s3 + $0x170] sm:$0xff]
      %v1081 = vld [vmem:[%s3 + $0x178] sm:$0xff]
      %v1082 = vld [vmem:[%s3 + $0x180] sm:$0xff]
      %v1083 = vld [vmem:[%s3 + $0x188] sm:$0xff]
      %v1084 = vld [vmem:[%s3 + $0x190] sm:$0xff]
      %v1085 = vld [vmem:[%s3 + $0x198] sm:$0xff]
      %v1086 = vld [vmem:[%s3 + $0x1a0] sm:$0xff]
      %v1087 = vld [vmem:[%s3 + $0x1a8] sm:$0xff]
      %v1088 = vld [vmem:[%s3 + $0x1b0] sm:$0xff]
      %v1089 = vld [vmem:[%s3 + $0x1b8] sm:$0xff]
      %vm1090 = vcmask 523264
      %v1092 = vsel %vm1090, %v909, 0
      %v1095 = vsel %vm1090, %v913, 0
      %v1098 = vsel %vm1090, %v917, 0
      %v1101 = vsel %vm1090, %v921, 0
      %v1104 = vsel %vm1090, %v925, 0
      %v1107 = vsel %vm1090, %v929, 0
      %v1110 = vsel %vm1090, %v933, 0
      %v1113 = vsel %vm1090, %v937, 0
      %v1116 = vsel %vm1090, %v941, 0
      %v1119 = vsel %vm1090, %v945, 0
      %v1122 = vsel %vm1090, %v949, 0
      %v1125 = vsel %vm1090, %v953, 0
      %v1128 = vsel %vm1090, %v957, 0
      %v1131 = vsel %vm1090, %v961, 0
      %v1134 = vsel %vm1090, %v965, 0
      %v1137 = vsel %vm1090, %v969, 0
      %v1140 = vsel %vm1090, %v973, 0
      %v1143 = vsel %vm1090, %v977, 0
      %v1146 = vsel %vm1090, %v981, 0
      %v1149 = vsel %vm1090, %v985, 0
      %v1152 = vsel %vm1090, %v989, 0
      %v1155 = vsel %vm1090, %v993, 0
      %v1158 = vsel %vm1090, %v997, 0
      %v1161 = vsel %vm1090, %v1001, 0
      %v1164 = vsel %vm1090, %v1005, 0
      %v1167 = vsel %vm1090, %v1009, 0
      %v1170 = vsel %vm1090, %v1013, 0
      %v1173 = vsel %vm1090, %v1017, 0
      %v1176 = vsel %vm1090, %v1021, 0
      %v1179 = vsel %vm1090, %v1025, 0
      %v1182 = vsel %vm1090, %v1029, 0
      %v1185 = vsel %vm1090, %v1033, 0
      %1187 = vmatprep.subr.mxu0 0.0
      %1188 = vmatpush1.msra.mxu0 %v1049
      %1189 = vmatprep.subr.mxu0 0.0
      %1190 = vmatpush1.msra.mxu0 %v1048
      %1191 = vmatprep.subr.mxu0 0.0
      %1192 = vmatpush1.msra.mxu0 %v1047
      %1193 = vmatprep.subr.mxu0 0.0
      %1194 = vmatpush1.msra.mxu0 %v1046
      %1195 = vmatprep.subr.mxu0 0.0
      %1196 = vmatpush1.msra.mxu0 %v1045
      %1197 = vmatprep.subr.mxu0 0.0
      %1198 = vmatpush1.msra.mxu0 %v1044
      %1199 = vmatprep.subr.mxu0 0.0
      %1200 = vmatpush1.msra.mxu0 %v1043
      %1201 = vmatprep.subr.mxu0 0.0
      %1202 = vmatpush1.msra.mxu0 %v1042
      %1203 = vmatprep.subr.mxu0 0.0
      %1204 = vmatpush1.msra.mxu0 %v1041
      %1205 = vmatprep.subr.mxu0 0.0
      %1206 = vmatpush1.msra.mxu0 %v1040
      %1207 = vmatprep.subr.mxu0 0.0
      %1208 = vmatpush1.msra.mxu0 %v1039
      %1209 = vmatprep.subr.mxu0 0.0
      %1210 = vmatpush1.msra.mxu0 %v1038
      %1211 = vmatprep.subr.mxu0 0.0
      %1212 = vmatpush1.msra.mxu0 %v1037
      %1213 = vmatprep.subr.mxu0 0.0
      %1214 = vmatpush1.msra.mxu0 %v1036
      %1215 = vmatprep.subr.mxu0 0.0
      %1216 = vmatpush1.msra.mxu0 %v1035
      %1217 = vmatprep.subr.mxu0 0.0
      %1218 = vmatpush1.msra.mxu0 %v1034
      %1219 = vmatprep.subr.mxu0 0.0
      %1220 = vmatpush2.msra.mxu0 %v1065
      %1221 = vmatprep.subr.mxu0 0.0
      %1222 = vmatpush2.msra.mxu0 %v1064
      %1223 = vmatprep.subr.mxu0 0.0
      %1224 = vmatpush2.msra.mxu0 %v1063
      %1225 = vmatprep.subr.mxu0 0.0
      %1226 = vmatpush2.msra.mxu0 %v1062
      %1227 = vmatprep.subr.mxu0 0.0
      %1228 = vmatpush2.msra.mxu0 %v1061
      %1229 = vmatprep.subr.mxu0 0.0
      %1230 = vmatpush2.msra.mxu0 %v1060
      %1231 = vmatprep.subr.mxu0 0.0
      %1232 = vmatpush2.msra.mxu0 %v1059
      %1233 = vmatprep.subr.mxu0 0.0
      %1234 = vmatpush2.msra.mxu0 %v1058
      %1235 = vmatprep.subr.mxu0 0.0
      %1236 = vmatpush2.msra.mxu0 %v1057
      %1237 = vmatprep.subr.mxu0 0.0
      %1238 = vmatpush2.msra.mxu0 %v1056
      %1239 = vmatprep.subr.mxu0 0.0
      %1240 = vmatpush2.msra.mxu0 %v1055
      %1241 = vmatprep.subr.mxu0 0.0
      %1242 = vmatpush2.msra.mxu0 %v1054
      %1243 = vmatprep.subr.mxu0 0.0
      %1244 = vmatpush2.msra.mxu0 %v1053
      %1245 = vmatprep.subr.mxu0 0.0
      %1246 = vmatpush2.msra.mxu0 %v1052
      %1247 = vmatprep.subr.mxu0 0.0
      %1248 = vmatpush2.msra.mxu0 %v1051
      %1249 = vmatprep.subr.mxu0 0.0
      %1250 = vmatpush2.msra.mxu0 %v1050
      %1251 = vmatprep.mubr.f32.mxu0 %v907
      %1252 = vmatmul.mubr.f32.gmra.mxu0 %v906
      %v1253 = vpop.f32.mrf.mxu0
      %v1254 = vadd.f32 0.0, %v1253
      %v1255 = vpop.f32.mrf.mxu0
      %1256 = vmatprep.mubr.f32.mxu0 %v911
      %1257 = vmatmul.mubr.f32.gmra.mxu0 %v910
      %v1258 = vpop.f32.mrf.mxu0
      %v1259 = vadd.f32 0.0, %v1258
      %v1260 = vpop.f32.mrf.mxu0
      %1261 = vmatprep.mubr.f32.mxu0 %v915
      %1262 = vmatmul.mubr.f32.gmra.mxu0 %v914
      %v1263 = vpop.f32.mrf.mxu0
      %v1264 = vadd.f32 0.0, %v1263
      %v1265 = vpop.f32.mrf.mxu0
      %1266 = vmatprep.mubr.f32.mxu0 %v919
      %1267 = vmatmul.mubr.f32.gmra.mxu0 %v918
      %v1268 = vpop.f32.mrf.mxu0
      %v1269 = vadd.f32 0.0, %v1268
      %v1270 = vpop.f32.mrf.mxu0
      %1271 = vmatprep.mubr.f32.mxu0 %v923
      %1272 = vmatmul.mubr.f32.gmra.mxu0 %v922
      %v1273 = vpop.f32.mrf.mxu0
      %v1274 = vadd.f32 0.0, %v1273
      %v1275 = vpop.f32.mrf.mxu0
      %1276 = vmatprep.mubr.f32.mxu0 %v927
      %1277 = vmatmul.mubr.f32.gmra.mxu0 %v926
      %v1278 = vpop.f32.mrf.mxu0
      %v1279 = vadd.f32 0.0, %v1278
      %v1280 = vpop.f32.mrf.mxu0
      %1281 = vmatprep.mubr.f32.mxu0 %v931
      %1282 = vmatmul.mubr.f32.gmra.mxu0 %v930
      %v1283 = vpop.f32.mrf.mxu0
      %v1284 = vadd.f32 0.0, %v1283
      %v1285 = vpop.f32.mrf.mxu0
      %1286 = vmatprep.mubr.f32.mxu0 %v935
      %1287 = vmatmul.mubr.f32.gmra.mxu0 %v934
      %v1288 = vpop.f32.mrf.mxu0
      %v1289 = vadd.f32 0.0, %v1288
      %v1290 = vpop.f32.mrf.mxu0
      %1291 = vmatprep.mubr.f32.mxu0 %v939
      %1292 = vmatmul.mubr.f32.gmra.mxu0 %v938
      %v1293 = vpop.f32.mrf.mxu0
      %v1294 = vadd.f32 0.0, %v1293
      %v1295 = vpop.f32.mrf.mxu0
      %1296 = vmatprep.mubr.f32.mxu0 %v943
      %1297 = vmatmul.mubr.f32.gmra.mxu0 %v942
      %v1298 = vpop.f32.mrf.mxu0
      %v1299 = vadd.f32 0.0, %v1298
      %v1300 = vpop.f32.mrf.mxu0
      %1301 = vmatprep.mubr.f32.mxu0 %v947
      %1302 = vmatmul.mubr.f32.gmra.mxu0 %v946
      %v1303 = vpop.f32.mrf.mxu0
      %v1304 = vadd.f32 0.0, %v1303
      %v1305 = vpop.f32.mrf.mxu0
      %1306 = vmatprep.mubr.f32.mxu0 %v951
      %1307 = vmatmul.mubr.f32.gmra.mxu0 %v950
      %v1308 = vpop.f32.mrf.mxu0
      %v1309 = vadd.f32 0.0, %v1308
      %v1310 = vpop.f32.mrf.mxu0
      %1311 = vmatprep.mubr.f32.mxu0 %v955
      %1312 = vmatmul.mubr.f32.gmra.mxu0 %v954
      %v1313 = vpop.f32.mrf.mxu0
      %v1314 = vadd.f32 0.0, %v1313
      %v1315 = vpop.f32.mrf.mxu0
      %1316 = vmatprep.mubr.f32.mxu0 %v959
      %1317 = vmatmul.mubr.f32.gmra.mxu0 %v958
      %v1318 = vpop.f32.mrf.mxu0
      %v1319 = vadd.f32 0.0, %v1318
      %v1320 = vpop.f32.mrf.mxu0
      %1321 = vmatprep.mubr.f32.mxu0 %v963
      %1322 = vmatmul.mubr.f32.gmra.mxu0 %v962
      %v1323 = vpop.f32.mrf.mxu0
      %v1324 = vadd.f32 0.0, %v1323
      %v1325 = vpop.f32.mrf.mxu0
      %1326 = vmatprep.mubr.f32.mxu0 %v967
      %1327 = vmatmul.mubr.f32.gmra.mxu0 %v966
      %v1328 = vpop.f32.mrf.mxu0
      %v1329 = vadd.f32 0.0, %v1328
      %v1330 = vpop.f32.mrf.mxu0
      %1331 = vmatprep.mubr.f32.mxu0 %v971
      %1332 = vmatmul.mubr.f32.gmra.mxu0 %v970
      %v1333 = vpop.f32.mrf.mxu0
      %v1334 = vadd.f32 0.0, %v1333
      %v1335 = vpop.f32.mrf.mxu0
      %1336 = vmatprep.mubr.f32.mxu0 %v975
      %1337 = vmatmul.mubr.f32.gmra.mxu0 %v974
      %v1338 = vpop.f32.mrf.mxu0
      %v1339 = vadd.f32 0.0, %v1338
      %v1340 = vpop.f32.mrf.mxu0
      %1341 = vmatprep.mubr.f32.mxu0 %v979
      %1342 = vmatmul.mubr.f32.gmra.mxu0 %v978
      %v1343 = vpop.f32.mrf.mxu0
      %v1344 = vadd.f32 0.0, %v1343
      %v1345 = vpop.f32.mrf.mxu0
      %1346 = vmatprep.mubr.f32.mxu0 %v983
      %1347 = vmatmul.mubr.f32.gmra.mxu0 %v982
      %v1348 = vpop.f32.mrf.mxu0
      %v1349 = vadd.f32 0.0, %v1348
      %v1350 = vpop.f32.mrf.mxu0
      %1351 = vmatprep.mubr.f32.mxu0 %v987
      %1352 = vmatmul.mubr.f32.gmra.mxu0 %v986
      %v1353 = vpop.f32.mrf.mxu0
      %v1354 = vadd.f32 0.0, %v1353
      %v1355 = vpop.f32.mrf.mxu0
      %1356 = vmatprep.mubr.f32.mxu0 %v991
      %1357 = vmatmul.mubr.f32.gmra.mxu0 %v990
      %v1358 = vpop.f32.mrf.mxu0
      %v1359 = vadd.f32 0.0, %v1358
      %v1360 = vpop.f32.mrf.mxu0
      %1361 = vmatprep.mubr.f32.mxu0 %v995
      %1362 = vmatmul.mubr.f32.gmra.mxu0 %v994
      %v1363 = vpop.f32.mrf.mxu0
      %v1364 = vadd.f32 0.0, %v1363
      %v1365 = vpop.f32.mrf.mxu0
      %1366 = vmatprep.mubr.f32.mxu0 %v999
      %1367 = vmatmul.mubr.f32.gmra.mxu0 %v998
      %v1368 = vpop.f32.mrf.mxu0
      %v1369 = vadd.f32 0.0, %v1368
      %v1370 = vpop.f32.mrf.mxu0
      %1371 = vmatprep.mubr.f32.mxu0 %v1003
      %1372 = vmatmul.mubr.f32.gmra.mxu0 %v1002
      %v1373 = vpop.f32.mrf.mxu0
      %v1374 = vadd.f32 0.0, %v1373
      %v1375 = vpop.f32.mrf.mxu0
      %1376 = vmatprep.mubr.f32.mxu0 %v1007
      %1377 = vmatmul.mubr.f32.gmra.mxu0 %v1006
      %v1378 = vpop.f32.mrf.mxu0
      %v1379 = vadd.f32 0.0, %v1378
      %v1380 = vpop.f32.mrf.mxu0
      %1381 = vmatprep.mubr.f32.mxu0 %v1011
      %1382 = vmatmul.mubr.f32.gmra.mxu0 %v1010
      %v1383 = vpop.f32.mrf.mxu0
      %v1384 = vadd.f32 0.0, %v1383
      %v1385 = vpop.f32.mrf.mxu0
      %1386 = vmatprep.mubr.f32.mxu0 %v1015
      %1387 = vmatmul.mubr.f32.gmra.mxu0 %v1014
      %v1388 = vpop.f32.mrf.mxu0
      %v1389 = vadd.f32 0.0, %v1388
      %v1390 = vpop.f32.mrf.mxu0
      %1391 = vmatprep.mubr.f32.mxu0 %v1019
      %1392 = vmatmul.mubr.f32.gmra.mxu0 %v1018
      %v1393 = vpop.f32.mrf.mxu0
      %v1394 = vadd.f32 0.0, %v1393
      %v1395 = vpop.f32.mrf.mxu0
      %1396 = vmatprep.mubr.f32.mxu0 %v1023
      %1397 = vmatmul.mubr.f32.gmra.mxu0 %v1022
      %v1398 = vpop.f32.mrf.mxu0
      %v1399 = vadd.f32 0.0, %v1398
      %v1400 = vpop.f32.mrf.mxu0
      %1401 = vmatprep.mubr.f32.mxu0 %v1027
      %1402 = vmatmul.mubr.f32.gmra.mxu0 %v1026
      %v1403 = vpop.f32.mrf.mxu0
      %v1404 = vadd.f32 0.0, %v1403
      %v1405 = vpop.f32.mrf.mxu0
      %1406 = vmatprep.mubr.f32.mxu0 %v1031
      %1407 = vmatmul.mubr.f32.gmra.mxu0 %v1030
      %v1408 = vpop.f32.mrf.mxu0
      %v1409 = vadd.f32 0.0, %v1408
      %v1410 = vpop.f32.mrf.mxu0
      %1411 = vdwg.mxu0
      %1412 = vmatprep.subr.mxu0 0.0
      %1413 = vmatpush1.msra.mxu0 %v1081
      %1414 = vmatprep.subr.mxu0 0.0
      %1415 = vmatpush1.msra.mxu0 %v1080
      %1416 = vmatprep.subr.mxu0 0.0
      %1417 = vmatpush1.msra.mxu0 %v1079
      %1418 = vmatprep.subr.mxu0 0.0
      %1419 = vmatpush1.msra.mxu0 %v1078
      %1420 = vmatprep.subr.mxu0 0.0
      %1421 = vmatpush1.msra.mxu0 %v1077
      %1422 = vmatprep.subr.mxu0 0.0
      %1423 = vmatpush1.msra.mxu0 %v1076
      %1424 = vmatprep.subr.mxu0 0.0
      %1425 = vmatpush1.msra.mxu0 %v1075
      %1426 = vmatprep.subr.mxu0 0.0
      %1427 = vmatpush1.msra.mxu0 %v1074
      %1428 = vmatprep.subr.mxu0 0.0
      %1429 = vmatpush1.msra.mxu0 %v1073
      %1430 = vmatprep.subr.mxu0 0.0
      %1431 = vmatpush1.msra.mxu0 %v1072
      %1432 = vmatprep.subr.mxu0 0.0
      %1433 = vmatpush1.msra.mxu0 %v1071
      %1434 = vmatprep.subr.mxu0 0.0
      %1435 = vmatpush1.msra.mxu0 %v1070
      %1436 = vmatprep.subr.mxu0 0.0
      %1437 = vmatpush1.msra.mxu0 %v1069
      %1438 = vmatprep.subr.mxu0 0.0
      %1439 = vmatpush1.msra.mxu0 %v1068
      %1440 = vmatprep.subr.mxu0 0.0
      %1441 = vmatpush1.msra.mxu0 %v1067
      %1442 = vmatprep.subr.mxu0 0.0
      %1443 = vmatpush1.msra.mxu0 %v1066
      %1444 = vmatprep.subr.mxu0 0.0
      %1445 = vmatpush2.msra.mxu0 0.0
      %1446 = vmatprep.subr.mxu0 0.0
      %1447 = vmatpush2.msra.mxu0 0.0
      %1448 = vmatprep.subr.mxu0 0.0
      %1449 = vmatpush2.msra.mxu0 0.0
      %1450 = vmatprep.subr.mxu0 0.0
      %1451 = vmatpush2.msra.mxu0 0.0
      %1452 = vmatprep.subr.mxu0 0.0
      %1453 = vmatpush2.msra.mxu0 0.0
      %1454 = vmatprep.subr.mxu0 0.0
      %1455 = vmatpush2.msra.mxu0 0.0
      %1456 = vmatprep.subr.mxu0 0.0
      %1457 = vmatpush2.msra.mxu0 0.0
      %1458 = vmatprep.subr.mxu0 0.0
      %1459 = vmatpush2.msra.mxu0 0.0
      %1460 = vmatprep.subr.mxu0 0.0
      %1461 = vmatpush2.msra.mxu0 %v1089
      %1462 = vmatprep.subr.mxu0 0.0
      %1463 = vmatpush2.msra.mxu0 %v1088
      %1464 = vmatprep.subr.mxu0 0.0
      %1465 = vmatpush2.msra.mxu0 %v1087
      %1466 = vmatprep.subr.mxu0 0.0
      %1467 = vmatpush2.msra.mxu0 %v1086
      %1468 = vmatprep.subr.mxu0 0.0
      %1469 = vmatpush2.msra.mxu0 %v1085
      %1470 = vmatprep.subr.mxu0 0.0
      %1471 = vmatpush2.msra.mxu0 %v1084
      %1472 = vmatprep.subr.mxu0 0.0
      %1473 = vmatpush2.msra.mxu0 %v1083
      %1474 = vmatprep.subr.mxu0 0.0
      %1475 = vmatpush2.msra.mxu0 %v1082
      %1476 = vmatprep.mubr.f32.mxu0 %v1092
      %1477 = vmatmul.mubr.f32.gmra.mxu0 %v908
      %v1478 = vpop.f32.mrf.mxu0
      %v1479 = vadd.f32 %v1254, %v1478
      %v1480 = vpop.f32.mrf.mxu0
      %1481 = vmatprep.mubr.f32.mxu0 %v1095
      %1482 = vmatmul.mubr.f32.gmra.mxu0 %v912
      %v1483 = vpop.f32.mrf.mxu0
      %v1484 = vadd.f32 %v1259, %v1483
      %v1485 = vpop.f32.mrf.mxu0
      %1486 = vmatprep.mubr.f32.mxu0 %v1098
      %1487 = vmatmul.mubr.f32.gmra.mxu0 %v916
      %v1488 = vpop.f32.mrf.mxu0
      %v1489 = vadd.f32 %v1264, %v1488
      %v1490 = vpop.f32.mrf.mxu0
      %1491 = vmatprep.mubr.f32.mxu0 %v1101
      %1492 = vmatmul.mubr.f32.gmra.mxu0 %v920
      %v1493 = vpop.f32.mrf.mxu0
      %v1494 = vadd.f32 %v1269, %v1493
      %v1495 = vpop.f32.mrf.mxu0
      %1496 = vmatprep.mubr.f32.mxu0 %v1104
      %1497 = vmatmul.mubr.f32.gmra.mxu0 %v924
      %v1498 = vpop.f32.mrf.mxu0
      %v1499 = vadd.f32 %v1274, %v1498
      %v1500 = vpop.f32.mrf.mxu0
      %1501 = vmatprep.mubr.f32.mxu0 %v1107
      %1502 = vmatmul.mubr.f32.gmra.mxu0 %v928
      %v1503 = vpop.f32.mrf.mxu0
      %v1504 = vadd.f32 %v1279, %v1503
      %v1505 = vpop.f32.mrf.mxu0
      %1506 = vmatprep.mubr.f32.mxu0 %v1110
      %1507 = vmatmul.mubr.f32.gmra.mxu0 %v932
      %v1508 = vpop.f32.mrf.mxu0
      %v1509 = vadd.f32 %v1284, %v1508
      %v1510 = vpop.f32.mrf.mxu0
      %1511 = vmatprep.mubr.f32.mxu0 %v1113
      %1512 = vmatmul.mubr.f32.gmra.mxu0 %v936
      %v1513 = vpop.f32.mrf.mxu0
      %v1514 = vadd.f32 %v1289, %v1513
      %v1515 = vpop.f32.mrf.mxu0
      %1516 = vmatprep.mubr.f32.mxu0 %v1116
      %1517 = vmatmul.mubr.f32.gmra.mxu0 %v940
      %v1518 = vpop.f32.mrf.mxu0
      %v1519 = vadd.f32 %v1294, %v1518
      %v1520 = vpop.f32.mrf.mxu0
      %1521 = vmatprep.mubr.f32.mxu0 %v1119
      %1522 = vmatmul.mubr.f32.gmra.mxu0 %v944
      %v1523 = vpop.f32.mrf.mxu0
      %v1524 = vadd.f32 %v1299, %v1523
      %v1525 = vpop.f32.mrf.mxu0
      %1526 = vmatprep.mubr.f32.mxu0 %v1122
      %1527 = vmatmul.mubr.f32.gmra.mxu0 %v948
      %v1528 = vpop.f32.mrf.mxu0
      %v1529 = vadd.f32 %v1304, %v1528
      %v1530 = vpop.f32.mrf.mxu0
      %1531 = vmatprep.mubr.f32.mxu0 %v1125
      %1532 = vmatmul.mubr.f32.gmra.mxu0 %v952
      %v1533 = vpop.f32.mrf.mxu0
      %v1534 = vadd.f32 %v1309, %v1533
      %v1535 = vpop.f32.mrf.mxu0
      %1536 = vmatprep.mubr.f32.mxu0 %v1128
      %1537 = vmatmul.mubr.f32.gmra.mxu0 %v956
      %v1538 = vpop.f32.mrf.mxu0
      %v1539 = vadd.f32 %v1314, %v1538
      %v1540 = vpop.f32.mrf.mxu0
      %1541 = vmatprep.mubr.f32.mxu0 %v1131
      %1542 = vmatmul.mubr.f32.gmra.mxu0 %v960
      %v1543 = vpop.f32.mrf.mxu0
      %v1544 = vadd.f32 %v1319, %v1543
      %v1545 = vpop.f32.mrf.mxu0
      %1546 = vmatprep.mubr.f32.mxu0 %v1134
      %1547 = vmatmul.mubr.f32.gmra.mxu0 %v964
      %v1548 = vpop.f32.mrf.mxu0
      %v1549 = vadd.f32 %v1324, %v1548
      %v1550 = vpop.f32.mrf.mxu0
      %1551 = vmatprep.mubr.f32.mxu0 %v1137
      %1552 = vmatmul.mubr.f32.gmra.mxu0 %v968
      %v1553 = vpop.f32.mrf.mxu0
      %v1554 = vadd.f32 %v1329, %v1553
      %v1555 = vpop.f32.mrf.mxu0
      %1556 = vmatprep.mubr.f32.mxu0 %v1140
      %1557 = vmatmul.mubr.f32.gmra.mxu0 %v972
      %v1558 = vpop.f32.mrf.mxu0
      %v1559 = vadd.f32 %v1334, %v1558
      %v1560 = vpop.f32.mrf.mxu0
      %1561 = vmatprep.mubr.f32.mxu0 %v1143
      %1562 = vmatmul.mubr.f32.gmra.mxu0 %v976
      %v1563 = vpop.f32.mrf.mxu0
      %v1564 = vadd.f32 %v1339, %v1563
      %v1565 = vpop.f32.mrf.mxu0
      %1566 = vmatprep.mubr.f32.mxu0 %v1146
      %1567 = vmatmul.mubr.f32.gmra.mxu0 %v980
      %v1568 = vpop.f32.mrf.mxu0
      %v1569 = vadd.f32 %v1344, %v1568
      %v1570 = vpop.f32.mrf.mxu0
      %1571 = vmatprep.mubr.f32.mxu0 %v1149
      %1572 = vmatmul.mubr.f32.gmra.mxu0 %v984
      %v1573 = vpop.f32.mrf.mxu0
      %v1574 = vadd.f32 %v1349, %v1573
      %v1575 = vpop.f32.mrf.mxu0
      %1576 = vmatprep.mubr.f32.mxu0 %v1152
      %1577 = vmatmul.mubr.f32.gmra.mxu0 %v988
      %v1578 = vpop.f32.mrf.mxu0
      %v1579 = vadd.f32 %v1354, %v1578
      %v1580 = vpop.f32.mrf.mxu0
      %1581 = vmatprep.mubr.f32.mxu0 %v1155
      %1582 = vmatmul.mubr.f32.gmra.mxu0 %v992
      %v1583 = vpop.f32.mrf.mxu0
      %v1584 = vadd.f32 %v1359, %v1583
      %v1585 = vpop.f32.mrf.mxu0
      %1586 = vmatprep.mubr.f32.mxu0 %v1158
      %1587 = vmatmul.mubr.f32.gmra.mxu0 %v996
      %v1588 = vpop.f32.mrf.mxu0
      %v1589 = vadd.f32 %v1364, %v1588
      %v1590 = vpop.f32.mrf.mxu0
      %1591 = vmatprep.mubr.f32.mxu0 %v1161
      %1592 = vmatmul.mubr.f32.gmra.mxu0 %v1000
      %v1593 = vpop.f32.mrf.mxu0
      %v1594 = vadd.f32 %v1369, %v1593
      %v1595 = vpop.f32.mrf.mxu0
      %1596 = vmatprep.mubr.f32.mxu0 %v1164
      %1597 = vmatmul.mubr.f32.gmra.mxu0 %v1004
      %v1598 = vpop.f32.mrf.mxu0
      %v1599 = vadd.f32 %v1374, %v1598
      %v1600 = vpop.f32.mrf.mxu0
      %1601 = vmatprep.mubr.f32.mxu0 %v1167
      %1602 = vmatmul.mubr.f32.gmra.mxu0 %v1008
      %v1603 = vpop.f32.mrf.mxu0
      %v1604 = vadd.f32 %v1379, %v1603
      %v1605 = vpop.f32.mrf.mxu0
      %1606 = vmatprep.mubr.f32.mxu0 %v1170
      %1607 = vmatmul.mubr.f32.gmra.mxu0 %v1012
      %v1608 = vpop.f32.mrf.mxu0
      %v1609 = vadd.f32 %v1384, %v1608
      %v1610 = vpop.f32.mrf.mxu0
      %1611 = vmatprep.mubr.f32.mxu0 %v1173
      %1612 = vmatmul.mubr.f32.gmra.mxu0 %v1016
      %v1613 = vpop.f32.mrf.mxu0
      %v1614 = vadd.f32 %v1389, %v1613
      %v1615 = vpop.f32.mrf.mxu0
      %1616 = vmatprep.mubr.f32.mxu0 %v1176
      %1617 = vmatmul.mubr.f32.gmra.mxu0 %v1020
      %v1618 = vpop.f32.mrf.mxu0
      %v1619 = vadd.f32 %v1394, %v1618
      %v1620 = vpop.f32.mrf.mxu0
      %1621 = vmatprep.mubr.f32.mxu0 %v1179
      %1622 = vmatmul.mubr.f32.gmra.mxu0 %v1024
      %v1623 = vpop.f32.mrf.mxu0
      %v1624 = vadd.f32 %v1399, %v1623
      %v1625 = vpop.f32.mrf.mxu0
      %1626 = vmatprep.mubr.f32.mxu0 %v1182
      %1627 = vmatmul.mubr.f32.gmra.mxu0 %v1028
      %v1628 = vpop.f32.mrf.mxu0
      %v1629 = vadd.f32 %v1404, %v1628
      %v1630 = vpop.f32.mrf.mxu0
      %1631 = vmatprep.mubr.f32.mxu0 %v1185
      %1632 = vmatmul.mubr.f32.gmra.mxu0 %v1032
      %v1633 = vpop.f32.mrf.mxu0
      %v1634 = vadd.f32 %v1409, %v1633
      %v1635 = vpop.f32.mrf.mxu0
      %1636 = vdwg.mxu0
      %vm1637 = vcmask 392192
      %1638 = vst.msk [vmem:[%s199] sm:$0xff] %vm1637, %v1479
      %1639 = vst.msk [vmem:[%s199 + $0x8] sm:$0xff] %vm1637, %v1484
      %1640 = vst.msk [vmem:[%s199 + $0x10] sm:$0xff] %vm1637, %v1489
      %1641 = vst.msk [vmem:[%s199 + $0x18] sm:$0xff] %vm1637, %v1494
      %1642 = vst.msk [vmem:[%s199 + $0x20] sm:$0xff] %vm1637, %v1499
      %1643 = vst.msk [vmem:[%s199 + $0x28] sm:$0xff] %vm1637, %v1504
      %1644 = vst.msk [vmem:[%s199 + $0x30] sm:$0xff] %vm1637, %v1509
      %1645 = vst.msk [vmem:[%s199 + $0x38] sm:$0xff] %vm1637, %v1514
      %1646 = vst.msk [vmem:[%s199 + $0x40] sm:$0xff] %vm1637, %v1519
      %1647 = vst.msk [vmem:[%s199 + $0x48] sm:$0xff] %vm1637, %v1524
      %1648 = vst.msk [vmem:[%s199 + $0x50] sm:$0xff] %vm1637, %v1529
      %1649 = vst.msk [vmem:[%s199 + $0x58] sm:$0xff] %vm1637, %v1534
      %1650 = vst.msk [vmem:[%s199 + $0x60] sm:$0xff] %vm1637, %v1539
      %1651 = vst.msk [vmem:[%s199 + $0x68] sm:$0xff] %vm1637, %v1544
      %1652 = vst.msk [vmem:[%s199 + $0x70] sm:$0xff] %vm1637, %v1549
      %1653 = vst.msk [vmem:[%s199 + $0x78] sm:$0xff] %vm1637, %v1554
      %1654 = vst.msk [vmem:[%s199 + $0x80] sm:$0xff] %vm1637, %v1559
      %1655 = vst.msk [vmem:[%s199 + $0x88] sm:$0xff] %vm1637, %v1564
      %1656 = vst.msk [vmem:[%s199 + $0x90] sm:$0xff] %vm1637, %v1569
      %1657 = vst.msk [vmem:[%s199 + $0x98] sm:$0xff] %vm1637, %v1574
      %1658 = vst.msk [vmem:[%s199 + $0xa0] sm:$0xff] %vm1637, %v1579
      %1659 = vst.msk [vmem:[%s199 + $0xa8] sm:$0xff] %vm1637, %v1584
      %1660 = vst.msk [vmem:[%s199 + $0xb0] sm:$0xff] %vm1637, %v1589
      %1661 = vst.msk [vmem:[%s199 + $0xb8] sm:$0xff] %vm1637, %v1594
      %1662 = vst.msk [vmem:[%s199 + $0xc0] sm:$0xff] %vm1637, %v1599
      %1663 = vst.msk [vmem:[%s199 + $0xc8] sm:$0xff] %vm1637, %v1604
      %1664 = vst.msk [vmem:[%s199 + $0xd0] sm:$0xff] %vm1637, %v1609
      %1665 = vst.msk [vmem:[%s199 + $0xd8] sm:$0xff] %vm1637, %v1614
      %1666 = vst.msk [vmem:[%s199 + $0xe0] sm:$0xff] %vm1637, %v1619
      %1667 = vst.msk [vmem:[%s199 + $0xe8] sm:$0xff] %vm1637, %v1624
      %1668 = vst.msk [vmem:[%s199 + $0xf0] sm:$0xff] %vm1637, %v1629
      %1669 = vst.msk [vmem:[%s199 + $0xf8] sm:$0xff] %vm1637, %v1634
      %s1670 = smul.u32 32, %s15
      %p1671 = scmp.lt.s32.totalorder %s1670, 63
      %s1672 = scalar_select %p1671, %s1670, 63
      %s1673 = smul.addr %s1672, 8
      %s1674 = scalar_lea.vmem %s4, %s1673
      // Predicated region
      $region37: #{_lambda_.1} parent=35 // pred_check
        %p1675 = pneg %p122
      $region38: #{_lambda_.1} parent=35 // pred_check_branch
        %1677 = sbr.rel (%p1675) target = $region40
      $region39: #{_lambda_.1} parent=35 // pred_region
        %s1678 = smul.u32 32, %s15
      $region40: #{_lambda_.1} parent=35 // pred_fallthru
        _
    $region36: #{_lambda_.1} parent=5 // pred_fallthru
      _
    %p1679 = scmp.le.s32.totalorder 2, %s10
    // Predicated region
    $region41: #{_lambda_.1} parent=5 // pred_check
      %p1680 = pneg %p1679
    $region42: #{_lambda_.1} parent=5 // pred_check_branch
      %1682 = sbr.rel (%p1680) target = $region44
    $region43: #{_lambda_.1} parent=5 // pred_region
      %s1683 = ssub.s32 %s10, 2
      // Predicated region
      $region45: #{_lambda_.1} parent=43 // pred_check
        %p1684 = pneg %p128
      $region46: #{_lambda_.1} parent=43 // pred_check_branch
        %1686 = sbr.rel (%p1684) target = $region48
      $region47: #{_lambda_.1} parent=43 // pred_region
        %s1687 = smul.u32 32, %s16
        %p1688 = scmp.lt.s32.totalorder %s1687, 63
        %s1689 = scalar_select %p1688, %s1687, 63
        %s1690 = smul.addr %s1689, 8
        %s1691 = scalar_lea.vmem %s4, %s1690
      $region48: #{_lambda_.1} parent=43 // pred_fallthru
        _
    $region44: #{_lambda_.1} parent=5 // pred_fallthru
      _
  $region6: #{_lambda_.1} parent=0 // loop_footer
    %s14 = sadd.s32 1, %s10
  $region7: #{_lambda_.1} parent=0 // loop_footer_branch
    %9 = sbr.rel target = $region3
  $region8: #{_lambda_.1} parent=0 // loop_exit
    _

</llo_original>
